<compile_context>
chip_gen: v7x
topology: tpu7x:2x2x1
jax: 0.10.0
libtpu: 0.0.40
codegen_flags: <defaults>
</compile_context>

<pallas_src>
import numpy as np
import jax
import jax.numpy as jnp
from jax.experimental import pallas as pl
from jax.experimental.pallas import tpu as pltpu

# ----------------------------- config (mirrors opt.*) -----------------------
BATCH    = 2
H_CROP   = 16
W_CROP   = 16
H_FULL   = 24          # full image the crop is taken from
W_FULL   = 24
L_2D     = 4           # opt.arch.posenc.L_2D
HIDDEN   = 32
SKIP     = (2,)        # opt.arch.skip
BARF_C2F = (0.0, 0.4)  # opt.barf_c2f
PROGRESS = 0.3         # deterministic stand-in for the learned `progress`

INPUT_2D_DIM = 2 + 4 * L_2D          # 18
PE_DIM       = 4 * L_2D              # 16
# get_layer_dims(opt.arch.layers) -> 4 linear layers, last outputs rgb(3)
LAYER_DIMS = [(INPUT_2D_DIM, HIDDEN),
              (HIDDEN, HIDDEN),
              (HIDDEN + INPUT_2D_DIM, HIDDEN),   # skip layer gets +input_2D_dim
              (HIDDEN, 3)]

HW      = H_CROP * W_CROP            # 256 (power of two -> lane-tile aligned)
M_TOTAL = BATCH * HW                 # 512 pixels -> lane dimension
Y0_CROP = H_FULL // 2 - H_CROP // 2
X0_CROP = W_FULL // 2 - W_CROP // 2
SX = W_FULL / max(H_FULL, W_FULL)
SY = H_FULL / max(H_FULL, W_FULL)

# ----------------------------- compile-time c2f + layout constants ----------
def _c2f_weights():
    # TODO(synk): PROGRESS is a compile-time constant here; a traced `progress`
    # would require passing cw via SMEM instead of folding it into the weights.
    alpha = (PROGRESS - BARF_C2F[0]) / (BARF_C2F[1] - BARF_C2F[0]) * L_2D
    k = np.arange(L_2D, dtype=np.float64)
    return ((1.0 - np.cos(np.clip(alpha - k, 0.0, 1.0) * np.pi)) / 2.0
            ).astype(np.float32)

CW = _c2f_weights()                                            # [L_2D]

# kernel enc row order : [sin(x f0..3), sin(y f0..3), cos(x f0..3), cos(y f0..3), x, y]
# torch  enc col order : [x, y, sin(x f0..3), cos(x f0..3), sin(y f0..3), cos(y f0..3)]
ENC_PERM = np.array([2, 3, 4, 5, 10, 11, 12, 13,
                     6, 7, 8, 9, 14, 15, 16, 17, 0, 1], dtype=np.int32)
CW_COLS  = np.concatenate([np.tile(CW, 4),
                           np.ones(2, np.float32)]).astype(np.float32)  # [18]

# packed weight blob: 8-row-aligned bands, 128 lanes wide, biases at col 64
BLOB_ROWS = 136
ROW_W0    = 0      # [32,18] layer-0 weight (perm + cw folded); bias @ col 64
ROW_W1    = 32     # [32,32]                                   ; bias @ col 64
ROW_W2F   = 64     # [32,32] skip-layer feat weight            ; bias @ col 64
ROW_W2E   = 96     # [32,18] skip-layer enc weight (perm + cw folded)
ROW_W3    = 128    # [3,32] in an 8-row band                   ; bias @ col 64
BIAS_COL  = 64


# ----------------------------- Pallas kernel --------------------------------
def neural_image_kernel(warp_ref,   # SMEM  [BATCH, 2]
                        blob_ref,   # VMEM  [BLOB_ROWS, 128] packed weights
                        out_ref):   # VMEM  [BATCH, 3, HW]
    f32 = jnp.float32

    # ---- hoist all SMEM scalar reads above the vector code ------------------
    wxs = [warp_ref[b, 0] for b in range(BATCH)]
    wys = [warp_ref[b, 1] for b in range(BATCH)]

    # ---- fused pixel-grid generation (pixels on lanes) ----------------------
    m = jax.lax.broadcasted_iota(jnp.int32, (1, M_TOTAL), 1)     # flat pixel id
    b_idx = jnp.right_shift(m, int(HW).bit_length() - 1)         # m // HW
    p  = jnp.bitwise_and(m, HW - 1)                              # m % HW
    yy = jnp.right_shift(p, int(W_CROP).bit_length() - 1)        # p // W
    xx = jnp.bitwise_and(p, W_CROP - 1)                          # p % W
    cx = ((xx.astype(f32) + (X0_CROP + 0.5)) / W_FULL * 2.0 - 1.0) * SX
    cy = ((yy.astype(f32) + (Y0_CROP + 0.5)) / H_FULL * 2.0 - 1.0) * SY

    # ---- translation warp (nested where over batch) --------------------------
    # TODO(synk): original BARF-planar also supports an sl3->SL3 homography
    # warp; only the 2-DOF translation warp is implemented here.
    wx = wxs[-1]
    wy = wys[-1]
    for b in range(BATCH - 1):
        wx = jnp.where(b_idx == b, wxs[b], wx)
        wy = jnp.where(b_idx == b, wys[b], wy)
    x = cx + wx                                                  # [1, M]
    y = cy + wy                                                  # [1, M]

    # ---- positional encoding: sin block [8,M], cos block [8,M] ---------------
    r8   = jax.lax.broadcasted_iota(jnp.int32, (8, M_TOTAL), 0)
    kfi  = jnp.bitwise_and(r8, L_2D - 1)                         # frequency idx
    freq = jnp.left_shift(1, kfi).astype(f32) * np.pi            # 2^k * pi
    xy8  = jnp.where(r8 < L_2D, x, y)                            # [8, M]
    spec = xy8 * freq
    # enc rows: [sin(x f), sin(y f)] | [cos(x f), cos(y f)] | x | y  -> [18, M]
    enc = jnp.concatenate([jnp.sin(spec), jnp.cos(spec), x, y], axis=0)

    # ---- unpack weights from the single blob (static value slices) ----------
    band0 = blob_ref[ROW_W0:ROW_W0 + 32, :]
    band1 = blob_ref[ROW_W1:ROW_W1 + 32, :]
    band2 = blob_ref[ROW_W2F:ROW_W2F + 32, :]
    band3 = blob_ref[ROW_W2E:ROW_W2E + 32, :]
    band4 = blob_ref[ROW_W3:ROW_W3 + 8, :]

    w0,  b0 = band0[:, :INPUT_2D_DIM], band0[:, BIAS_COL:BIAS_COL + 1]
    w1,  b1 = band1[:, :HIDDEN],       band1[:, BIAS_COL:BIAS_COL + 1]
    w2f, b2 = band2[:, :HIDDEN],       band2[:, BIAS_COL:BIAS_COL + 1]
    w2e     = band3[:, :INPUT_2D_DIM]
    w3,  b3 = band4[:, :HIDDEN],       band4[:, BIAS_COL:BIAS_COL + 1]  # 8-row padded

    def dot(a, b_):
        return jnp.dot(a, b_, preferred_element_type=jnp.float32)

    # ---- MLP: activations are [features, pixels]; 5 MXU pushes total --------
    h = jnp.maximum(dot(w0, enc) + b0, 0.0)                      # [32, M]
    h = jnp.maximum(dot(w1, h) + b1, 0.0)                        # [32, M]
    h = jnp.maximum(dot(w2f, h) + dot(w2e, enc) + b2, 0.0)       # [32, M]
    rgb = jax.nn.sigmoid(dot(w3, h) + b3)                        # [8, M] rows 3..7 junk

    # ---- NCHW-flat store: per-batch 256-lane slices (lane-tile aligned) ------
    for b in range(BATCH):
        out_ref[b] = rgb[0:3, b * HW:(b + 1) * HW]


# ----------------------------- wrapper ---------------------------------------
def pack_weights(params):
    """Pack all torch-layout ([out,in]) weights into one padded VMEM blob."""
    (w0, b0), (w1, b1), (w2, b2), (w3, b3) = params
    w0k = w0[:, ENC_PERM] * CW_COLS[None, :]          # perm to kernel enc order + cw
    w2f = w2[:, :HIDDEN]
    w2e = w2[:, HIDDEN:][:, ENC_PERM] * CW_COLS[None, :]

    blob = jnp.zeros((BLOB_ROWS, 128), jnp.float32)
    blob = blob.at[ROW_W0:ROW_W0 + 32, :INPUT_2D_DIM].set(w0k)
    blob = blob.at[ROW_W0:ROW_W0 + 32, BIAS_COL].set(b0)
    blob = blob.at[ROW_W1:ROW_W1 + 32, :HIDDEN].set(w1)
    blob = blob.at[ROW_W1:ROW_W1 + 32, BIAS_COL].set(b1)
    blob = blob.at[ROW_W2F:ROW_W2F + 32, :HIDDEN].set(w2f)
    blob = blob.at[ROW_W2F:ROW_W2F + 32, BIAS_COL].set(b2)
    blob = blob.at[ROW_W2E:ROW_W2E + 32, :INPUT_2D_DIM].set(w2e)
    blob = blob.at[ROW_W3:ROW_W3 + 3, :HIDDEN].set(w3)
    blob = blob.at[ROW_W3:ROW_W3 + 3, BIAS_COL].set(b3)
    return blob


def graph_forward(warp_param, blob):
    out = pl.pallas_call(
        neural_image_kernel,
        out_shape=jax.ShapeDtypeStruct((BATCH, 3, HW), jnp.float32),
        in_specs=[pl.BlockSpec(memory_space=pltpu.MemorySpace.SMEM),   # warp_param
                  pl.BlockSpec(memory_space=pltpu.MemorySpace.VMEM)],  # weight blob
        out_specs=pl.BlockSpec(memory_space=pltpu.MemorySpace.VMEM),
    )(warp_param, blob)

    rgb_warped     = out.transpose(0, 2, 1)                      # [B, HW, 3]
    rgb_warped_map = out.reshape(BATCH, 3, H_CROP, W_CROP)       # [B, 3, H, W] (no transpose)
    return rgb_warped, rgb_warped_map


# ----------------------------- init + pure-JAX reference ---------------------
def init_params(key):
    """PyTorch nn.Linear init (uniform +-1/sqrt(fan_in)); weights stored [out, in]."""
    params = []
    for li, (k_in, k_out) in enumerate(LAYER_DIMS):
        key, kw, kb = jax.random.split(key, 3)
        bound = 1.0 / np.sqrt(k_in)
        w = jax.random.uniform(kw, (k_out, k_in), jnp.float32, -bound, bound)
        b = jax.random.uniform(kb, (k_out,), jnp.float32, -bound, bound)
        if li == 0:  # barf_c2f scaling of the first layer
            scale = np.float32(np.sqrt(INPUT_2D_DIM / 2.0))
            w = w * scale
            b = b * scale
        params.append((w, b))
    return params, key


def reference_forward(warp_param, params):
    """Original (row-layout) math: grid -> warp -> posenc -> MLP -> sigmoid."""
    y_range = ((jnp.arange(Y0_CROP, Y0_CROP + H_CROP, dtype=jnp.float32) + 0.5)
               / H_FULL * 2 - 1) * SY
    x_range = ((jnp.arange(X0_CROP, X0_CROP + W_CROP, dtype=jnp.float32) + 0.5)
               / W_FULL * 2 - 1) * SX
    Y, X = jnp.meshgrid(y_range, x_range, indexing="ij")
    xy = jnp.stack([X, Y], axis=-1).reshape(-1, 2)                 # [HW, 2]
    xy = jnp.tile(xy[None], (BATCH, 1, 1)) + warp_param[:, None, :]
    coords_flat = xy.reshape(-1, 2)                                # [M, 2]

    freq = 2.0 ** jnp.arange(L_2D, dtype=jnp.float32) * np.pi
    alpha = (PROGRESS - BARF_C2F[0]) / (BARF_C2F[1] - BARF_C2F[0]) * L_2D
    k = jnp.arange(L_2D, dtype=jnp.float32)
    cw = (1.0 - jnp.cos(jnp.clip(alpha - k, 0.0, 1.0) * np.pi)) / 2.0

    x0 = coords_flat[:, 0:1]
    x1 = coords_flat[:, 1:2]
    s0 = jnp.sin(x0 * freq) * cw
    c0 = jnp.cos(x0 * freq) * cw
    s1 = jnp.sin(x1 * freq) * cw
    c1 = jnp.cos(x1 * freq) * cw
    enc = jnp.concatenate([coords_flat, s0, c0, s1, c1], axis=-1)  # [M, 18]

    feat = enc
    for li, (w, b) in enumerate(params):
        if li in SKIP:
            feat = jnp.concatenate([feat, enc], axis=-1)
        feat = feat @ w.T + b
        if li != len(params) - 1:
            feat = jnp.maximum(feat, 0.0)
    return jax.nn.sigmoid(feat)                                    # [M, 3]


# ----------------------------- main ------------------------------------------
if __name__ == "__main__":
    key = jax.random.PRNGKey(0)
    params, key = init_params(key)
    key, kwarp = jax.random.split(key)
    # warp_param.weight (translation, warp_dof=2), deterministic
    warp_param = 0.1 * jax.random.normal(kwarp, (BATCH, 2), jnp.float32)

    blob = jax.block_until_ready(pack_weights(params))
    fwd = jax.jit(graph_forward)
    rgb_warped, rgb_warped_map = fwd(warp_param, blob)
    rgb_warped = jax.block_until_ready(rgb_warped)
    rgb_warped_map = jax.block_until_ready(rgb_warped_map)

    assert rgb_warped.shape == (BATCH, H_CROP * W_CROP, 3)
    assert rgb_warped_map.shape == (BATCH, 3, H_CROP, W_CROP)

    # Correctness check against a pure-JAX reference of the same math.
    ref = reference_forward(warp_param, params)
    np.testing.assert_allclose(np.asarray(rgb_warped.reshape(-1, 3)),
                               np.asarray(ref), rtol=5e-3, atol=5e-3)
    # Both outputs come from the same kernel result -> must match exactly.
    np.testing.assert_array_equal(
        np.asarray(rgb_warped_map.transpose(0, 2, 3, 1).reshape(-1, 3)),
        np.asarray(rgb_warped.reshape(-1, 3)))

    print("KERNEL_OK")
</pallas_src>

<mosaic_0001>
module attributes {stable_mosaic.version = 11 : i64} {
  func.func @neural_image_kernel(%arg0: memref<2x2xf32, #tpu.memory_space<smem>>, %arg1: memref<136x128xf32, #tpu.memory_space<vmem>>, %arg2: memref<2x3x256xf32, #tpu.memory_space<vmem>>) attributes {dimension_semantics = [], scalar_prefetch = 0 : i64, scratch_operands = 0 : i64, tpu.core_type = #tpu.core_type<tc>} {
    %c0 = arith.constant 0 : index
    %c0_0 = arith.constant 0 : index
    %0 = memref.load %arg0[%c0, %c0_0] : memref<2x2xf32, #tpu.memory_space<smem>>
    %c1 = arith.constant 1 : index
    %c0_1 = arith.constant 0 : index
    %1 = memref.load %arg0[%c1, %c0_1] : memref<2x2xf32, #tpu.memory_space<smem>>
    %c0_2 = arith.constant 0 : index
    %c1_3 = arith.constant 1 : index
    %2 = memref.load %arg0[%c0_2, %c1_3] : memref<2x2xf32, #tpu.memory_space<smem>>
    %c1_4 = arith.constant 1 : index
    %c1_5 = arith.constant 1 : index
    %3 = memref.load %arg0[%c1_4, %c1_5] : memref<2x2xf32, #tpu.memory_space<smem>>
    %4 = tpu.iota {dimensions = array<i32: 1>} : vector<1x512xi32>
    %c8_i32 = arith.constant 8 : i32
    %5 = vector.broadcast %c8_i32 : i32 to vector<1x512xi32>
    %6 = arith.shrsi %4, %5 : vector<1x512xi32>
    %c255_i32 = arith.constant 255 : i32
    %7 = vector.broadcast %c255_i32 : i32 to vector<1x512xi32>
    %8 = arith.andi %4, %7 : vector<1x512xi32>
    %c4_i32 = arith.constant 4 : i32
    %9 = vector.broadcast %c4_i32 : i32 to vector<1x512xi32>
    %10 = arith.shrsi %8, %9 : vector<1x512xi32>
    %c15_i32 = arith.constant 15 : i32
    %11 = vector.broadcast %c15_i32 : i32 to vector<1x512xi32>
    %12 = arith.andi %8, %11 : vector<1x512xi32>
    %13 = arith.sitofp %12 : vector<1x512xi32> to vector<1x512xf32>
    %cst = arith.constant 4.500000e+00 : f32
    %14 = vector.broadcast %cst : f32 to vector<1x512xf32>
    %15 = arith.addf %13, %14 : vector<1x512xf32>
    %cst_6 = arith.constant 2.400000e+01 : f32
    %16 = vector.broadcast %cst_6 : f32 to vector<1x512xf32>
    %17 = arith.divf %15, %16 : vector<1x512xf32>
    %cst_7 = arith.constant 2.000000e+00 : f32
    %18 = vector.broadcast %cst_7 : f32 to vector<1x512xf32>
    %19 = arith.mulf %17, %18 : vector<1x512xf32>
    %cst_8 = arith.constant 1.000000e+00 : f32
    %20 = vector.broadcast %cst_8 : f32 to vector<1x512xf32>
    %21 = arith.subf %19, %20 : vector<1x512xf32>
    %cst_9 = arith.constant 1.000000e+00 : f32
    %22 = vector.broadcast %cst_9 : f32 to vector<1x512xf32>
    %23 = arith.mulf %21, %22 : vector<1x512xf32>
    %24 = arith.sitofp %10 : vector<1x512xi32> to vector<1x512xf32>
    %cst_10 = arith.constant 4.500000e+00 : f32
    %25 = vector.broadcast %cst_10 : f32 to vector<1x512xf32>
    %26 = arith.addf %24, %25 : vector<1x512xf32>
    %cst_11 = arith.constant 2.400000e+01 : f32
    %27 = vector.broadcast %cst_11 : f32 to vector<1x512xf32>
    %28 = arith.divf %26, %27 : vector<1x512xf32>
    %cst_12 = arith.constant 2.000000e+00 : f32
    %29 = vector.broadcast %cst_12 : f32 to vector<1x512xf32>
    %30 = arith.mulf %28, %29 : vector<1x512xf32>
    %cst_13 = arith.constant 1.000000e+00 : f32
    %31 = vector.broadcast %cst_13 : f32 to vector<1x512xf32>
    %32 = arith.subf %30, %31 : vector<1x512xf32>
    %cst_14 = arith.constant 1.000000e+00 : f32
    %33 = vector.broadcast %cst_14 : f32 to vector<1x512xf32>
    %34 = arith.mulf %32, %33 : vector<1x512xf32>
    %c0_i32 = arith.constant 0 : i32
    %35 = vector.broadcast %c0_i32 : i32 to vector<1x512xi32>
    %36 = arith.cmpi eq, %6, %35 : vector<1x512xi32>
    %37 = vector.broadcast %0 : f32 to vector<1x512xf32>
    %38 = vector.broadcast %1 : f32 to vector<1x512xf32>
    %39 = arith.select %36, %37, %38 : vector<1x512xi1>, vector<1x512xf32>
    %c0_i32_15 = arith.constant 0 : i32
    %40 = vector.broadcast %c0_i32_15 : i32 to vector<1x512xi32>
    %41 = arith.cmpi eq, %6, %40 : vector<1x512xi32>
    %42 = vector.broadcast %2 : f32 to vector<1x512xf32>
    %43 = vector.broadcast %3 : f32 to vector<1x512xf32>
    %44 = arith.select %41, %42, %43 : vector<1x512xi1>, vector<1x512xf32>
    %45 = arith.addf %23, %39 : vector<1x512xf32>
    %46 = arith.addf %34, %44 : vector<1x512xf32>
    %47 = tpu.iota {dimensions = array<i32: 0>} : vector<8x512xi32>
    %c3_i32 = arith.constant 3 : i32
    %48 = vector.broadcast %c3_i32 : i32 to vector<8x512xi32>
    %49 = arith.andi %47, %48 : vector<8x512xi32>
    %c1_i32 = arith.constant 1 : i32
    %50 = vector.broadcast %c1_i32 : i32 to vector<8x512xi32>
    %51 = arith.shli %50, %49 : vector<8x512xi32>
    %52 = arith.sitofp %51 : vector<8x512xi32> to vector<8x512xf32>
    %cst_16 = arith.constant 3.14159274 : f32
    %53 = vector.broadcast %cst_16 : f32 to vector<8x512xf32>
    %54 = arith.mulf %52, %53 : vector<8x512xf32>
    %c4_i32_17 = arith.constant 4 : i32
    %55 = vector.broadcast %c4_i32_17 : i32 to vector<8x512xi32>
    %56 = arith.cmpi slt, %47, %55 : vector<8x512xi32>
    %57 = vector.shape_cast %45 : vector<1x512xf32> to vector<1x512xf32>
    %58 = vector.broadcast %57 : vector<1x512xf32> to vector<8x512xf32>
    %59 = vector.shape_cast %46 : vector<1x512xf32> to vector<1x512xf32>
    %60 = vector.broadcast %59 : vector<1x512xf32> to vector<8x512xf32>
    %61 = arith.select %56, %58, %60 : vector<8x512xi1>, vector<8x512xf32>
    %62 = arith.mulf %61, %54 : vector<8x512xf32>
    %63 = math.sin %62 : vector<8x512xf32>
    %64 = math.cos %62 : vector<8x512xf32>
    %65 = tpu.concatenate %63, %64, %45, %46 in 0 : vector<8x512xf32>, vector<8x512xf32>, vector<1x512xf32>, vector<1x512xf32> -> vector<18x512xf32>
    %c0_18 = arith.constant 0 : index
    %c0_19 = arith.constant 0 : index
    %66 = vector.load %arg1[%c0_18, %c0_19] : memref<136x128xf32, #tpu.memory_space<vmem>>, vector<32x128xf32>
    %c32 = arith.constant 32 : index
    %c0_20 = arith.constant 0 : index
    %67 = vector.load %arg1[%c32, %c0_20] : memref<136x128xf32, #tpu.memory_space<vmem>>, vector<32x128xf32>
    %c64 = arith.constant 64 : index
    %c0_21 = arith.constant 0 : index
    %68 = vector.load %arg1[%c64, %c0_21] : memref<136x128xf32, #tpu.memory_space<vmem>>, vector<32x128xf32>
    %c96 = arith.constant 96 : index
    %c0_22 = arith.constant 0 : index
    %69 = vector.load %arg1[%c96, %c0_22] : memref<136x128xf32, #tpu.memory_space<vmem>>, vector<32x128xf32>
    %c128 = arith.constant 128 : index
    %c0_23 = arith.constant 0 : index
    %70 = vector.load %arg1[%c128, %c0_23] : memref<136x128xf32, #tpu.memory_space<vmem>>, vector<8x128xf32>
    %71 = vector.extract_strided_slice %66 {offsets = [0, 0], sizes = [32, 18], strides = [1, 1]} : vector<32x128xf32> to vector<32x18xf32>
    %72 = vector.extract_strided_slice %66 {offsets = [0, 64], sizes = [32, 1], strides = [1, 1]} : vector<32x128xf32> to vector<32x1xf32>
    %73 = vector.extract_strided_slice %67 {offsets = [0, 0], sizes = [32, 32], strides = [1, 1]} : vector<32x128xf32> to vector<32x32xf32>
    %74 = vector.extract_strided_slice %67 {offsets = [0, 64], sizes = [32, 1], strides = [1, 1]} : vector<32x128xf32> to vector<32x1xf32>
    %75 = vector.extract_strided_slice %68 {offsets = [0, 0], sizes = [32, 32], strides = [1, 1]} : vector<32x128xf32> to vector<32x32xf32>
    %76 = vector.extract_strided_slice %68 {offsets = [0, 64], sizes = [32, 1], strides = [1, 1]} : vector<32x128xf32> to vector<32x1xf32>
    %77 = vector.extract_strided_slice %69 {offsets = [0, 0], sizes = [32, 18], strides = [1, 1]} : vector<32x128xf32> to vector<32x18xf32>
    %78 = vector.extract_strided_slice %70 {offsets = [0, 0], sizes = [8, 32], strides = [1, 1]} : vector<8x128xf32> to vector<8x32xf32>
    %79 = vector.extract_strided_slice %70 {offsets = [0, 64], sizes = [8, 1], strides = [1, 1]} : vector<8x128xf32> to vector<8x1xf32>
    %cst_24 = arith.constant dense<0.000000e+00> : vector<32x512xf32>
    %80 = tpu.matmul %71, %65, %cst_24 {dimension_numbers = #tpu.dot_dimension_numbers<[1], [0], [0], [1], [0, 0, 1, 1], [], []>} : vector<32x18xf32>, vector<18x512xf32>, vector<32x512xf32> -> vector<32x512xf32>
    %81 = vector.broadcast %72 : vector<32x1xf32> to vector<32x512xf32>
    %82 = arith.addf %80, %81 : vector<32x512xf32>
    %cst_25 = arith.constant 0.000000e+00 : f32
    %83 = vector.broadcast %cst_25 : f32 to vector<32x512xf32>
    %84 = arith.maximumf %82, %83 : vector<32x512xf32>
    %cst_26 = arith.constant dense<0.000000e+00> : vector<32x512xf32>
    %85 = tpu.matmul %73, %84, %cst_26 {dimension_numbers = #tpu.dot_dimension_numbers<[1], [0], [0], [1], [0, 0, 1, 1], [], []>} : vector<32x32xf32>, vector<32x512xf32>, vector<32x512xf32> -> vector<32x512xf32>
    %86 = vector.broadcast %74 : vector<32x1xf32> to vector<32x512xf32>
    %87 = arith.addf %85, %86 : vector<32x512xf32>
    %cst_27 = arith.constant 0.000000e+00 : f32
    %88 = vector.broadcast %cst_27 : f32 to vector<32x512xf32>
    %89 = arith.maximumf %87, %88 : vector<32x512xf32>
    %cst_28 = arith.constant dense<0.000000e+00> : vector<32x512xf32>
    %90 = tpu.matmul %75, %89, %cst_28 {dimension_numbers = #tpu.dot_dimension_numbers<[1], [0], [0], [1], [0, 0, 1, 1], [], []>} : vector<32x32xf32>, vector<32x512xf32>, vector<32x512xf32> -> vector<32x512xf32>
    %cst_29 = arith.constant dense<0.000000e+00> : vector<32x512xf32>
    %91 = tpu.matmul %77, %65, %cst_29 {dimension_numbers = #tpu.dot_dimension_numbers<[1], [0], [0], [1], [0, 0, 1, 1], [], []>} : vector<32x18xf32>, vector<18x512xf32>, vector<32x512xf32> -> vector<32x512xf32>
    %92 = arith.addf %90, %91 : vector<32x512xf32>
    %93 = vector.broadcast %76 : vector<32x1xf32> to vector<32x512xf32>
    %94 = arith.addf %92, %93 : vector<32x512xf32>
    %cst_30 = arith.constant 0.000000e+00 : f32
    %95 = vector.broadcast %cst_30 : f32 to vector<32x512xf32>
    %96 = arith.maximumf %94, %95 : vector<32x512xf32>
    %cst_31 = arith.constant dense<0.000000e+00> : vector<8x512xf32>
    %97 = tpu.matmul %78, %96, %cst_31 {dimension_numbers = #tpu.dot_dimension_numbers<[1], [0], [0], [1], [0, 0, 1, 1], [], []>} : vector<8x32xf32>, vector<32x512xf32>, vector<8x512xf32> -> vector<8x512xf32>
    %98 = vector.broadcast %79 : vector<8x1xf32> to vector<8x512xf32>
    %99 = arith.addf %97, %98 : vector<8x512xf32>
    %100 = arith.negf %99 : vector<8x512xf32>
    %101 = math.exp %100 : vector<8x512xf32>
    %cst_32 = arith.constant 1.000000e+00 : f32
    %102 = vector.broadcast %cst_32 : f32 to vector<8x512xf32>
    %103 = arith.addf %102, %101 : vector<8x512xf32>
    %104 = arith.divf %102, %103 : vector<8x512xf32>
    %105 = vector.extract_strided_slice %104 {offsets = [0, 0], sizes = [3, 256], strides = [1, 1]} : vector<8x512xf32> to vector<3x256xf32>
    %c0_33 = arith.constant 0 : index
    %c0_34 = arith.constant 0 : index
    %c0_35 = arith.constant 0 : index
    %106 = vector.load %arg2[%c0_33, %c0_34, %c0_35] : memref<2x3x256xf32, #tpu.memory_space<vmem>>, vector<1x3x256xf32>
    %107 = vector.shape_cast %106 : vector<1x3x256xf32> to vector<3x256xf32>
    %108 = vector.shape_cast %105 : vector<3x256xf32> to vector<1x3x256xf32>
    tpu.vector_store %arg2[%c0_33, %c0_34, %c0_35], %108 {strides = array<i32>} : memref<2x3x256xf32, #tpu.memory_space<vmem>>, vector<1x3x256xf32>,
    %109 = vector.extract_strided_slice %104 {offsets = [0, 256], sizes = [3, 256], strides = [1, 1]} : vector<8x512xf32> to vector<3x256xf32>
    %c1_36 = arith.constant 1 : index
    %c0_37 = arith.constant 0 : index
    %c0_38 = arith.constant 0 : index
    %110 = vector.load %arg2[%c1_36, %c0_37, %c0_38] : memref<2x3x256xf32, #tpu.memory_space<vmem>>, vector<1x3x256xf32>
    %111 = vector.shape_cast %110 : vector<1x3x256xf32> to vector<3x256xf32>
    %112 = vector.shape_cast %109 : vector<3x256xf32> to vector<1x3x256xf32>
    tpu.vector_store %arg2[%c1_36, %c0_37, %c0_38], %112 {strides = array<i32>} : memref<2x3x256xf32, #tpu.memory_space<vmem>>, vector<1x3x256xf32>,
    return
  }
}

</mosaic_0001>

<llo_original>
// kernel: graph_forward.1
$region0: #{graph_forward.1}
  #allocation0 [shape = 'u32[]', space=smem, size = 0x4, offset = 0x4, fixed_abs, tag = 'smem constant byte address 0x4 - core index']
  #allocation1 [shape = 'u32[144,128]{1,0:T(1,128)}', space=vmem, size = 0x12000, scoped, tag = 'internal scratch']
  %s0 = inlined_call_operand.hbm [shape: f32[2,2], index: 0, kind: input, shape index: {}]
  %s1 = inlined_call_operand.hbm [shape: f32[136,128], index: 1, kind: input, shape index: {}]
  %s2 = inlined_call_operand.vmem [shape: f32[2,3,256], index: 2, kind: output, shape index: {}]
  %s3 = sld [smem:[#allocation0]]
  $region26: #{graph_forward.1} parent=0
    _
  %s5 = ssub.s32 1, %s3
  %s6 = scalar_select 0, %s5, %s3
  $region1: #{graph_forward.1} parent=0
    #allocation2 [shape = 'u8[1024]{0}', space=smem, size = 0x400, scoped, tag = 'input window, operand 0, single buffered']
    #allocation3 [shape = 's32[1]{0}', space=sflag, size = 0x4, scoped, tag = 'scoped memory for graph_forward.1']
    #allocation4 [shape = 's32[1]{0}', space=sflag, size = 0x4, scoped, tag = 'scoped memory for graph_forward.1']
    #allocation5 [shape = 'u8[69632]{0}', space=vmem, size = 0x11000, scoped, tag = 'input window, operand 1, single buffered']
    %7 = vsyncpa [#allocation4], 0
    %8 = vsyncpa [#allocation3], 0
    // Predicated region
    $region2: #{graph_forward.1} parent=1 // pred_check
      _
    $region3: #{graph_forward.1} parent=1 // pred_check_branch
      %10 = sbr.rel (0) target = $region5
    $region4: #{graph_forward.1} parent=1 // pred_region
      %s12 = ssub.s32 32, 32
      %13 = vsyncadd [#allocation4], %s12
      %16 = dma.hbm_to_smem %s0, 32, [#allocation2], [#allocation4]
    $region5: #{graph_forward.1} parent=1 // pred_fallthru
      _
    // Predicated region
    $region6: #{graph_forward.1} parent=1 // pred_check
      _
    $region7: #{graph_forward.1} parent=1 // pred_check_branch
      %18 = sbr.rel (0) target = $region9
    $region8: #{graph_forward.1} parent=1 // pred_region
      %s20 = ssub.s32 2176, 2176
      %21 = vsyncadd [#allocation3], %s20
      %s22 = sshll.u32 [#allocation5], 4
      %s23 = int_to_ptr.vmem [resolvable:$true] %s22
      %28 = dma.hbm_to_vmem [thread:$0]  %s1, 2176, %s23, [#allocation3], 128, 128, 8
    $region9: #{graph_forward.1} parent=1 // pred_fallthru
      _
    // Predicated region
    $region10: #{graph_forward.1} parent=1 // pred_check
      _
    $region11: #{graph_forward.1} parent=1 // pred_check_branch
      %30 = sbr.rel (0) target = $region13
    $region12: #{graph_forward.1} parent=1 // pred_region
      %31 = dma.done [#allocation4], 32
    $region13: #{graph_forward.1} parent=1 // pred_fallthru
      _
    // Predicated region
    $region14: #{graph_forward.1} parent=1 // pred_check
      _
    $region15: #{graph_forward.1} parent=1 // pred_check_branch
      %33 = sbr.rel (0) target = $region17
    $region16: #{graph_forward.1} parent=1 // pred_region
      %34 = dma.done [#allocation3], 2176
    $region17: #{graph_forward.1} parent=1 // pred_fallthru
      _
    %35 = sfence
    %s36 = sld [smem:[#allocation2]]
    %s37 = sld [smem:[#allocation2 + $0x80]]
    %s38 = sld [smem:[#allocation2 + $0x1]]
    %s39 = sld [smem:[#allocation2 + $0x81]]
    %v40 = vlaneseq
    %v41 = vand.u32 %v40, 127
    %v42 = vadd.s32 %v41, 128
    %v43 = vadd.s32 %v41, 256
    %v44 = vadd.s32 %v41, 384
    %v45 = vshra.s32 %v41, 8
    %v46 = vshra.s32 %v42, 8
    %v47 = vshra.s32 %v43, 8
    %v48 = vshra.s32 %v44, 8
    %v49 = vand.u32 %v41, 255
    %v50 = vand.u32 %v42, 255
    %v51 = vand.u32 %v43, 255
    %v52 = vand.u32 %v44, 255
    %v53 = vshra.s32 %v49, 4
    %v54 = vshra.s32 %v50, 4
    %v55 = vshra.s32 %v51, 4
    %v56 = vshra.s32 %v52, 4
    %v57 = vand.u32 %v49, 15
    %v58 = vand.u32 %v50, 15
    %v59 = vand.u32 %v51, 15
    %v60 = vand.u32 %v52, 15
    %v61 = vcvt.s32.f32 %v57
    %v62 = vcvt.s32.f32 %v58
    %v63 = vcvt.s32.f32 %v59
    %v64 = vcvt.s32.f32 %v60
    %v65 = vadd.f32 %v61, 4.5
    %v66 = vadd.f32 %v62, 4.5
    %v67 = vadd.f32 %v63, 4.5
    %v68 = vadd.f32 %v64, 4.5
    %v69 = vrcp.pop 24.0
    %v70 = vmul.f32 %v65, %v69
    %v71 = vmul.f32 %v66, %v69
    %v72 = vmul.f32 %v67, %v69
    %v73 = vmul.f32 %v68, %v69
    %v74 = vmul.f32 %v70, 2.0
    %v75 = vmul.f32 %v71, 2.0
    %v76 = vmul.f32 %v72, 2.0
    %v77 = vmul.f32 %v73, 2.0
    %v78 = vsub.f32 %v74, 1.0
    %v79 = vsub.f32 %v75, 1.0
    %v80 = vsub.f32 %v76, 1.0
    %v81 = vsub.f32 %v77, 1.0
    %v82 = vcvt.s32.f32 %v53
    %v83 = vcvt.s32.f32 %v54
    %v84 = vcvt.s32.f32 %v55
    %v85 = vcvt.s32.f32 %v56
    %v86 = vadd.f32 %v82, 4.5
    %v87 = vadd.f32 %v83, 4.5
    %v88 = vadd.f32 %v84, 4.5
    %v89 = vadd.f32 %v85, 4.5
    %v90 = vmul.f32 %v86, %v69
    %v91 = vmul.f32 %v87, %v69
    %v92 = vmul.f32 %v88, %v69
    %v93 = vmul.f32 %v89, %v69
    %v94 = vmul.f32 %v90, 2.0
    %v95 = vmul.f32 %v91, 2.0
    %v96 = vmul.f32 %v92, 2.0
    %v97 = vmul.f32 %v93, 2.0
    %v98 = vsub.f32 %v94, 1.0
    %v99 = vsub.f32 %v95, 1.0
    %v100 = vsub.f32 %v96, 1.0
    %v101 = vsub.f32 %v97, 1.0
    %vm102 = vcmp.eq.s32.totalorder %v45, 0
    %vm103 = vcmp.eq.s32.totalorder %v46, 0
    %vm104 = vcmp.eq.s32.totalorder %v47, 0
    %vm105 = vcmp.eq.s32.totalorder %v48, 0
    %v106 = vstv %s36
    %v107 = vstv %s37
    %v108 = vsel %vm102, %v106, %v107
    %v109 = vsel %vm103, %v106, %v107
    %v110 = vsel %vm104, %v106, %v107
    %v111 = vsel %vm105, %v106, %v107
    %v112 = vstv %s38
    %v113 = vstv %s39
    %v114 = vsel %vm102, %v112, %v113
    %v115 = vsel %vm103, %v112, %v113
    %v116 = vsel %vm104, %v112, %v113
    %v117 = vsel %vm105, %v112, %v113
    %v118 = vadd.f32 %v78, %v108
    %v119 = vadd.f32 %v79, %v109
    %v120 = vadd.f32 %v80, %v110
    %v121 = vadd.f32 %v81, %v111
    %v122 = vadd.f32 %v98, %v114
    %v123 = vadd.f32 %v99, %v115
    %v124 = vadd.f32 %v100, %v116
    %v125 = vadd.f32 %v101, %v117
    %v126 = vlaneseq
    %v127 = vshrl.u32 %v126, 7
    %v128 = vand.u32 %v127, 3
    %v129 = vshll.u32 1, %v128
    %v130 = vcvt.s32.f32 %v129
    %v131 = vmul.f32 %v130, 3.1415927
    %vm132 = vcmp.lt.s32.totalorder %v127, 4
    %v133 = vsel %vm132, %v118, %v122
    %v134 = vsel %vm132, %v119, %v123
    %v135 = vsel %vm132, %v120, %v124
    %v136 = vsel %vm132, %v121, %v125
    %v137 = vmul.f32 %v133, %v131
    %v138 = vmul.f32 %v134, %v131
    %v139 = vmul.f32 %v135, %v131
    %v140 = vmul.f32 %v136, %v131
    %v141 = vand.u32 2147483647, %v137
    %vm142 = vcmp.le.f32.partialorder %v141, 0.7853982
    %vm143 = vcmp.lt.s32.totalorder %v137, 0
    %v144 = vand.u32 %v137, 2139095040
    %v145 = vshrl.u32 %v144, 23
    %v146 = vsub.s32 %v145, 127
    %v147 = vand.u32 2147483647, %v137
    %v148 = vand.u32 %v147, 8388607
    %v149 = vor.u32 %v148, 8388608
    %v150 = vsub.s32 0, %v149
    %v151 = vadd.s32 %v146, 1
    %vm152 = vcmp.gt.s32.totalorder %v151, 0
    %v153 = vsel %vm152, %v151, 0
    %v154 = vshrl.u32 %v153, 5
    %v155 = vand.u32 %v153, 31
    %v156 = vsub.s32 32, %v155
    %v157 = vshrl.u32 683565275, %v156
    %v158 = vshll.u32 683565275, %v155
    %v159 = vshrl.u32 2475754826, %v156
    %v160 = vor.u32 %v158, %v159
    %v161 = vshll.u32 2475754826, %v155
    %v162 = vshrl.u32 2131351028, %v156
    %v163 = vor.u32 %v161, %v162
    %v164 = vshll.u32 2131351028, %v155
    %v165 = vshrl.u32 2102212464, %v156
    %v166 = vor.u32 %v164, %v165
    %v167 = vshll.u32 2102212464, %v155
    %v168 = vshrl.u32 920167782, %v156
    %v169 = vor.u32 %v167, %v168
    %v170 = vshll.u32 920167782, %v155
    %v171 = vshrl.u32 1326507024, %v156
    %v172 = vor.u32 %v170, %v171
    %vm173 = vcmp.lt.s32.totalorder %v154, 1
    %vm174 = vcmp.lt.s32.totalorder %v154, 2
    %vm175 = vcmp.lt.s32.totalorder %v154, 3
    %vm176 = vcmp.lt.s32.totalorder %v154, 4
    %v177 = vsel %vm173, %v157, %v160
    %v178 = vsel %vm176, %v166, 2102212464
    %v179 = vsel %vm175, %v163, %v178
    %v180 = vsel %vm174, %v177, %v179
    %v181 = vsel %vm173, %v160, %v163
    %v182 = vsel %vm176, %v169, 920167782
    %v183 = vsel %vm175, %v166, %v182
    %v184 = vsel %vm174, %v181, %v183
    %v185 = vsel %vm173, %v163, %v166
    %v186 = vsel %vm176, %v172, 1326507024
    %v187 = vsel %vm175, %v169, %v186
    %v188 = vsel %vm174, %v185, %v187
    %v189 = vshll.u32 %v149, 8
    %v190 = vmul.u32.u64.compose %v189, %v188
    %v191 = vextract.low.u32 %v190
    %v192 = vextract.high.u32 %v190
    %v193 = vmul.u32.u64.compose %v189, %v184
    %v194 = vextract.low.u32 %v193
    %v195 = vextract.high.u32 %v193
    %v196 = vmul.u32 %v189, %v180
    %v197 = vadd.s32 %v192, %v194
    %vm198 = vc.u32 %v192, %v194
    %v199 = vadd.s32 %v195, 1
    %v200 = vsel %vm198, %v199, %v195
    %v201 = vadd.s32 %v196, %v200
    %v202 = vadd.s32 %v201, 536870912
    %v203 = vshrl.u32 %v202, 30
    %v204 = vshll.u32 %v203, 30
    %v205 = vsub.s32 %v201, %v204
    %vm206 = vcmp.lt.s32.totalorder %v205, 0
    %v207 = vsub.s32 0, %v205
    %v208 = vsel %vm206, %v207, %v205
    %v209 = vclz %v208
    %v210 = vsub.s32 %v209, 2
    %vm211 = vcmp.gt.s32.totalorder 0, %v210
    %v212 = vsel %vm211, 0, %v210
    %v213 = vsub.s32 32, %v212
    %v214 = vshll.u32 %v205, %v212
    %v215 = vshrl.u32 %v197, %v213
    %v216 = vor.u32 %v214, %v215
    %v217 = vsub.s32 4294967266, %v212
    %v218 = vadd.s32 %v217, 127
    %v219 = vshll.u32 %v218, 23
    %v220 = vor.u32 4788187, %v219
    %v221 = vand.u32 2147483647, %v220
    %v223 = vcvt.s32.f32 %v216
    %v224 = vmul.f32 %v223, %v221
    %v225 = vxor.u32 %v224, 2147483648
    %v226 = vsel %vm143, %v225, %v224
    %v227 = vsub.s32 4, %v203
    %v228 = vsel %vm143, %v227, %v203
    %v229 = vsel %vm142, %v137, %v226
    %v230 = vsel %vm142, 0, %v228
    %v231 = vcosq.f32.pop %v229
    %v232 = vsinq.f32.pop %v229
    %vm233 = vweird.f32 %v137
    %v234 = vadd.s32 %v230, 3
    %v235 = vand.u32 %v234, 3
    %vm236 = vcmp.lt.s32.totalorder %v235, 2
    %vm237 = vcmp.eq.s32.totalorder %v235, 0
    %v238 = vxor.u32 %v232, 2147483648
    %v239 = vsel %vm237, %v231, %v238
    %vm240 = vcmp.eq.s32.totalorder %v235, 2
    %v241 = vxor.u32 %v231, 2147483648
    %v242 = vsel %vm240, %v241, %v232
    %v243 = vsel %vm236, %v239, %v242
    %v244 = vsel %vm233, nan, %v243
    %v245 = vand.u32 2147483647, %v138
    %vm246 = vcmp.le.f32.partialorder %v245, 0.7853982
    %vm247 = vcmp.lt.s32.totalorder %v138, 0
    %v248 = vand.u32 %v138, 2139095040
    %v249 = vshrl.u32 %v248, 23
    %v250 = vsub.s32 %v249, 127
    %v251 = vand.u32 2147483647, %v138
    %v252 = vand.u32 %v251, 8388607
    %v253 = vor.u32 %v252, 8388608
    %v254 = vsub.s32 0, %v253
    %v255 = vadd.s32 %v250, 1
    %vm256 = vcmp.gt.s32.totalorder %v255, 0
    %v257 = vsel %vm256, %v255, 0
    %v258 = vshrl.u32 %v257, 5
    %v259 = vand.u32 %v257, 31
    %v260 = vsub.s32 32, %v259
    %v261 = vshrl.u32 683565275, %v260
    %v262 = vshll.u32 683565275, %v259
    %v263 = vshrl.u32 2475754826, %v260
    %v264 = vor.u32 %v262, %v263
    %v265 = vshll.u32 2475754826, %v259
    %v266 = vshrl.u32 2131351028, %v260
    %v267 = vor.u32 %v265, %v266
    %v268 = vshll.u32 2131351028, %v259
    %v269 = vshrl.u32 2102212464, %v260
    %v270 = vor.u32 %v268, %v269
    %v271 = vshll.u32 2102212464, %v259
    %v272 = vshrl.u32 920167782, %v260
    %v273 = vor.u32 %v271, %v272
    %v274 = vshll.u32 920167782, %v259
    %v275 = vshrl.u32 1326507024, %v260
    %v276 = vor.u32 %v274, %v275
    %vm277 = vcmp.lt.s32.totalorder %v258, 1
    %vm278 = vcmp.lt.s32.totalorder %v258, 2
    %vm279 = vcmp.lt.s32.totalorder %v258, 3
    %vm280 = vcmp.lt.s32.totalorder %v258, 4
    %v281 = vsel %vm277, %v261, %v264
    %v282 = vsel %vm280, %v270, 2102212464
    %v283 = vsel %vm279, %v267, %v282
    %v284 = vsel %vm278, %v281, %v283
    %v285 = vsel %vm277, %v264, %v267
    %v286 = vsel %vm280, %v273, 920167782
    %v287 = vsel %vm279, %v270, %v286
    %v288 = vsel %vm278, %v285, %v287
    %v289 = vsel %vm277, %v267, %v270
    %v290 = vsel %vm280, %v276, 1326507024
    %v291 = vsel %vm279, %v273, %v290
    %v292 = vsel %vm278, %v289, %v291
    %v293 = vshll.u32 %v253, 8
    %v294 = vmul.u32.u64.compose %v293, %v292
    %v295 = vextract.low.u32 %v294
    %v296 = vextract.high.u32 %v294
    %v297 = vmul.u32.u64.compose %v293, %v288
    %v298 = vextract.low.u32 %v297
    %v299 = vextract.high.u32 %v297
    %v300 = vmul.u32 %v293, %v284
    %v301 = vadd.s32 %v296, %v298
    %vm302 = vc.u32 %v296, %v298
    %v303 = vadd.s32 %v299, 1
    %v304 = vsel %vm302, %v303, %v299
    %v305 = vadd.s32 %v300, %v304
    %v306 = vadd.s32 %v305, 536870912
    %v307 = vshrl.u32 %v306, 30
    %v308 = vshll.u32 %v307, 30
    %v309 = vsub.s32 %v305, %v308
    %vm310 = vcmp.lt.s32.totalorder %v309, 0
    %v311 = vsub.s32 0, %v309
    %v312 = vsel %vm310, %v311, %v309
    %v313 = vclz %v312
    %v314 = vsub.s32 %v313, 2
    %vm315 = vcmp.gt.s32.totalorder 0, %v314
    %v316 = vsel %vm315, 0, %v314
    %v317 = vsub.s32 32, %v316
    %v318 = vshll.u32 %v309, %v316
    %v319 = vshrl.u32 %v301, %v317
    %v320 = vor.u32 %v318, %v319
    %v321 = vsub.s32 4294967266, %v316
    %v322 = vadd.s32 %v321, 127
    %v323 = vshll.u32 %v322, 23
    %v324 = vor.u32 4788187, %v323
    %v325 = vand.u32 2147483647, %v324
    %v327 = vcvt.s32.f32 %v320
    %v328 = vmul.f32 %v327, %v325
    %v329 = vxor.u32 %v328, 2147483648
    %v330 = vsel %vm247, %v329, %v328
    %v331 = vsub.s32 4, %v307
    %v332 = vsel %vm247, %v331, %v307
    %v333 = vsel %vm246, %v138, %v330
    %v334 = vsel %vm246, 0, %v332
    %v335 = vcosq.f32.pop %v333
    %v336 = vsinq.f32.pop %v333
    %vm337 = vweird.f32 %v138
    %v338 = vadd.s32 %v334, 3
    %v339 = vand.u32 %v338, 3
    %vm340 = vcmp.lt.s32.totalorder %v339, 2
    %vm341 = vcmp.eq.s32.totalorder %v339, 0
    %v342 = vxor.u32 %v336, 2147483648
    %v343 = vsel %vm341, %v335, %v342
    %vm344 = vcmp.eq.s32.totalorder %v339, 2
    %v345 = vxor.u32 %v335, 2147483648
    %v346 = vsel %vm344, %v345, %v336
    %v347 = vsel %vm340, %v343, %v346
    %v348 = vsel %vm337, nan, %v347
    %v349 = vand.u32 2147483647, %v139
    %vm350 = vcmp.le.f32.partialorder %v349, 0.7853982
    %vm351 = vcmp.lt.s32.totalorder %v139, 0
    %v352 = vand.u32 %v139, 2139095040
    %v353 = vshrl.u32 %v352, 23
    %v354 = vsub.s32 %v353, 127
    %v355 = vand.u32 2147483647, %v139
    %v356 = vand.u32 %v355, 8388607
    %v357 = vor.u32 %v356, 8388608
    %v358 = vsub.s32 0, %v357
    %v359 = vadd.s32 %v354, 1
    %vm360 = vcmp.gt.s32.totalorder %v359, 0
    %v361 = vsel %vm360, %v359, 0
    %v362 = vshrl.u32 %v361, 5
    %v363 = vand.u32 %v361, 31
    %v364 = vsub.s32 32, %v363
    %v365 = vshrl.u32 683565275, %v364
    %v366 = vshll.u32 683565275, %v363
    %v367 = vshrl.u32 2475754826, %v364
    %v368 = vor.u32 %v366, %v367
    %v369 = vshll.u32 2475754826, %v363
    %v370 = vshrl.u32 2131351028, %v364
    %v371 = vor.u32 %v369, %v370
    %v372 = vshll.u32 2131351028, %v363
    %v373 = vshrl.u32 2102212464, %v364
    %v374 = vor.u32 %v372, %v373
    %v375 = vshll.u32 2102212464, %v363
    %v376 = vshrl.u32 920167782, %v364
    %v377 = vor.u32 %v375, %v376
    %v378 = vshll.u32 920167782, %v363
    %v379 = vshrl.u32 1326507024, %v364
    %v380 = vor.u32 %v378, %v379
    %vm381 = vcmp.lt.s32.totalorder %v362, 1
    %vm382 = vcmp.lt.s32.totalorder %v362, 2
    %vm383 = vcmp.lt.s32.totalorder %v362, 3
    %vm384 = vcmp.lt.s32.totalorder %v362, 4
    %v385 = vsel %vm381, %v365, %v368
    %v386 = vsel %vm384, %v374, 2102212464
    %v387 = vsel %vm383, %v371, %v386
    %v388 = vsel %vm382, %v385, %v387
    %v389 = vsel %vm381, %v368, %v371
    %v390 = vsel %vm384, %v377, 920167782
    %v391 = vsel %vm383, %v374, %v390
    %v392 = vsel %vm382, %v389, %v391
    %v393 = vsel %vm381, %v371, %v374
    %v394 = vsel %vm384, %v380, 1326507024
    %v395 = vsel %vm383, %v377, %v394
    %v396 = vsel %vm382, %v393, %v395
    %v397 = vshll.u32 %v357, 8
    %v398 = vmul.u32.u64.compose %v397, %v396
    %v399 = vextract.low.u32 %v398
    %v400 = vextract.high.u32 %v398
    %v401 = vmul.u32.u64.compose %v397, %v392
    %v402 = vextract.low.u32 %v401
    %v403 = vextract.high.u32 %v401
    %v404 = vmul.u32 %v397, %v388
    %v405 = vadd.s32 %v400, %v402
    %vm406 = vc.u32 %v400, %v402
    %v407 = vadd.s32 %v403, 1
    %v408 = vsel %vm406, %v407, %v403
    %v409 = vadd.s32 %v404, %v408
    %v410 = vadd.s32 %v409, 536870912
    %v411 = vshrl.u32 %v410, 30
    %v412 = vshll.u32 %v411, 30
    %v413 = vsub.s32 %v409, %v412
    %vm414 = vcmp.lt.s32.totalorder %v413, 0
    %v415 = vsub.s32 0, %v413
    %v416 = vsel %vm414, %v415, %v413
    %v417 = vclz %v416
    %v418 = vsub.s32 %v417, 2
    %vm419 = vcmp.gt.s32.totalorder 0, %v418
    %v420 = vsel %vm419, 0, %v418
    %v421 = vsub.s32 32, %v420
    %v422 = vshll.u32 %v413, %v420
    %v423 = vshrl.u32 %v405, %v421
    %v424 = vor.u32 %v422, %v423
    %v425 = vsub.s32 4294967266, %v420
    %v426 = vadd.s32 %v425, 127
    %v427 = vshll.u32 %v426, 23
    %v428 = vor.u32 4788187, %v427
    %v429 = vand.u32 2147483647, %v428
    %v431 = vcvt.s32.f32 %v424
    %v432 = vmul.f32 %v431, %v429
    %v433 = vxor.u32 %v432, 2147483648
    %v434 = vsel %vm351, %v433, %v432
    %v435 = vsub.s32 4, %v411
    %v436 = vsel %vm351, %v435, %v411
    %v437 = vsel %vm350, %v139, %v434
    %v438 = vsel %vm350, 0, %v436
    %v439 = vcosq.f32.pop %v437
    %v440 = vsinq.f32.pop %v437
    %vm441 = vweird.f32 %v139
    %v442 = vadd.s32 %v438, 3
    %v443 = vand.u32 %v442, 3
    %vm444 = vcmp.lt.s32.totalorder %v443, 2
    %vm445 = vcmp.eq.s32.totalorder %v443, 0
    %v446 = vxor.u32 %v440, 2147483648
    %v447 = vsel %vm445, %v439, %v446
    %vm448 = vcmp.eq.s32.totalorder %v443, 2
    %v449 = vxor.u32 %v439, 2147483648
    %v450 = vsel %vm448, %v449, %v440
    %v451 = vsel %vm444, %v447, %v450
    %v452 = vsel %vm441, nan, %v451
    %v453 = vand.u32 2147483647, %v140
    %vm454 = vcmp.le.f32.partialorder %v453, 0.7853982
    %vm455 = vcmp.lt.s32.totalorder %v140, 0
    %v456 = vand.u32 %v140, 2139095040
    %v457 = vshrl.u32 %v456, 23
    %v458 = vsub.s32 %v457, 127
    %v459 = vand.u32 2147483647, %v140
    %v460 = vand.u32 %v459, 8388607
    %v461 = vor.u32 %v460, 8388608
    %v462 = vsub.s32 0, %v461
    %v463 = vadd.s32 %v458, 1
    %vm464 = vcmp.gt.s32.totalorder %v463, 0
    %v465 = vsel %vm464, %v463, 0
    %v466 = vshrl.u32 %v465, 5
    %v467 = vand.u32 %v465, 31
    %v468 = vsub.s32 32, %v467
    %v469 = vshrl.u32 683565275, %v468
    %v470 = vshll.u32 683565275, %v467
    %v471 = vshrl.u32 2475754826, %v468
    %v472 = vor.u32 %v470, %v471
    %v473 = vshll.u32 2475754826, %v467
    %v474 = vshrl.u32 2131351028, %v468
    %v475 = vor.u32 %v473, %v474
    %v476 = vshll.u32 2131351028, %v467
    %v477 = vshrl.u32 2102212464, %v468
    %v478 = vor.u32 %v476, %v477
    %v479 = vshll.u32 2102212464, %v467
    %v480 = vshrl.u32 920167782, %v468
    %v481 = vor.u32 %v479, %v480
    %v482 = vshll.u32 920167782, %v467
    %v483 = vshrl.u32 1326507024, %v468
    %v484 = vor.u32 %v482, %v483
    %vm485 = vcmp.lt.s32.totalorder %v466, 1
    %vm486 = vcmp.lt.s32.totalorder %v466, 2
    %vm487 = vcmp.lt.s32.totalorder %v466, 3
    %vm488 = vcmp.lt.s32.totalorder %v466, 4
    %v489 = vsel %vm485, %v469, %v472
    %v490 = vsel %vm488, %v478, 2102212464
    %v491 = vsel %vm487, %v475, %v490
    %v492 = vsel %vm486, %v489, %v491
    %v493 = vsel %vm485, %v472, %v475
    %v494 = vsel %vm488, %v481, 920167782
    %v495 = vsel %vm487, %v478, %v494
    %v496 = vsel %vm486, %v493, %v495
    %v497 = vsel %vm485, %v475, %v478
    %v498 = vsel %vm488, %v484, 1326507024
    %v499 = vsel %vm487, %v481, %v498
    %v500 = vsel %vm486, %v497, %v499
    %v501 = vshll.u32 %v461, 8
    %v502 = vmul.u32.u64.compose %v501, %v500
    %v503 = vextract.low.u32 %v502
    %v504 = vextract.high.u32 %v502
    %v505 = vmul.u32.u64.compose %v501, %v496
    %v506 = vextract.low.u32 %v505
    %v507 = vextract.high.u32 %v505
    %v508 = vmul.u32 %v501, %v492
    %v509 = vadd.s32 %v504, %v506
    %vm510 = vc.u32 %v504, %v506
    %v511 = vadd.s32 %v507, 1
    %v512 = vsel %vm510, %v511, %v507
    %v513 = vadd.s32 %v508, %v512
    %v514 = vadd.s32 %v513, 536870912
    %v515 = vshrl.u32 %v514, 30
    %v516 = vshll.u32 %v515, 30
    %v517 = vsub.s32 %v513, %v516
    %vm518 = vcmp.lt.s32.totalorder %v517, 0
    %v519 = vsub.s32 0, %v517
    %v520 = vsel %vm518, %v519, %v517
    %v521 = vclz %v520
    %v522 = vsub.s32 %v521, 2
    %vm523 = vcmp.gt.s32.totalorder 0, %v522
    %v524 = vsel %vm523, 0, %v522
    %v525 = vsub.s32 32, %v524
    %v526 = vshll.u32 %v517, %v524
    %v527 = vshrl.u32 %v509, %v525
    %v528 = vor.u32 %v526, %v527
    %v529 = vsub.s32 4294967266, %v524
    %v530 = vadd.s32 %v529, 127
    %v531 = vshll.u32 %v530, 23
    %v532 = vor.u32 4788187, %v531
    %v533 = vand.u32 2147483647, %v532
    %v535 = vcvt.s32.f32 %v528
    %v536 = vmul.f32 %v535, %v533
    %v537 = vxor.u32 %v536, 2147483648
    %v538 = vsel %vm455, %v537, %v536
    %v539 = vsub.s32 4, %v515
    %v540 = vsel %vm455, %v539, %v515
    %v541 = vsel %vm454, %v140, %v538
    %v542 = vsel %vm454, 0, %v540
    %v543 = vcosq.f32.pop %v541
    %v544 = vsinq.f32.pop %v541
    %vm545 = vweird.f32 %v140
    %v546 = vadd.s32 %v542, 3
    %v547 = vand.u32 %v546, 3
    %vm548 = vcmp.lt.s32.totalorder %v547, 2
    %vm549 = vcmp.eq.s32.totalorder %v547, 0
    %v550 = vxor.u32 %v544, 2147483648
    %v551 = vsel %vm549, %v543, %v550
    %vm552 = vcmp.eq.s32.totalorder %v547, 2
    %v553 = vxor.u32 %v543, 2147483648
    %v554 = vsel %vm552, %v553, %v544
    %v555 = vsel %vm548, %v551, %v554
    %v556 = vsel %vm545, nan, %v555
    %v557 = vand.u32 2147483647, %v137
    %vm558 = vcmp.le.f32.partialorder %v557, 0.7853982
    %vm559 = vcmp.lt.s32.totalorder %v137, 0
    %v560 = vand.u32 %v137, 2139095040
    %v561 = vshrl.u32 %v560, 23
    %v562 = vsub.s32 %v561, 127
    %v563 = vand.u32 2147483647, %v137
    %v564 = vand.u32 %v563, 8388607
    %v565 = vor.u32 %v564, 8388608
    %v566 = vsub.s32 0, %v565
    %v567 = vadd.s32 %v562, 1
    %vm568 = vcmp.gt.s32.totalorder %v567, 0
    %v569 = vsel %vm568, %v567, 0
    %v570 = vshrl.u32 %v569, 5
    %v571 = vand.u32 %v569, 31
    %v572 = vsub.s32 32, %v571
    %v573 = vshrl.u32 683565275, %v572
    %v574 = vshll.u32 683565275, %v571
    %v575 = vshrl.u32 2475754826, %v572
    %v576 = vor.u32 %v574, %v575
    %v577 = vshll.u32 2475754826, %v571
    %v578 = vshrl.u32 2131351028, %v572
    %v579 = vor.u32 %v577, %v578
    %v580 = vshll.u32 2131351028, %v571
    %v581 = vshrl.u32 2102212464, %v572
    %v582 = vor.u32 %v580, %v581
    %v583 = vshll.u32 2102212464, %v571
    %v584 = vshrl.u32 920167782, %v572
    %v585 = vor.u32 %v583, %v584
    %v586 = vshll.u32 920167782, %v571
    %v587 = vshrl.u32 1326507024, %v572
    %v588 = vor.u32 %v586, %v587
    %vm589 = vcmp.lt.s32.totalorder %v570, 1
    %vm590 = vcmp.lt.s32.totalorder %v570, 2
    %vm591 = vcmp.lt.s32.totalorder %v570, 3
    %vm592 = vcmp.lt.s32.totalorder %v570, 4
    %v593 = vsel %vm589, %v573, %v576
    %v594 = vsel %vm592, %v582, 2102212464
    %v595 = vsel %vm591, %v579, %v594
    %v596 = vsel %vm590, %v593, %v595
    %v597 = vsel %vm589, %v576, %v579
    %v598 = vsel %vm592, %v585, 920167782
    %v599 = vsel %vm591, %v582, %v598
    %v600 = vsel %vm590, %v597, %v599
    %v601 = vsel %vm589, %v579, %v582
    %v602 = vsel %vm592, %v588, 1326507024
    %v603 = vsel %vm591, %v585, %v602
    %v604 = vsel %vm590, %v601, %v603
    %v605 = vshll.u32 %v565, 8
    %v606 = vmul.u32.u64.compose %v605, %v604
    %v607 = vextract.low.u32 %v606
    %v608 = vextract.high.u32 %v606
    %v609 = vmul.u32.u64.compose %v605, %v600
    %v610 = vextract.low.u32 %v609
    %v611 = vextract.high.u32 %v609
    %v612 = vmul.u32 %v605, %v596
    %v613 = vadd.s32 %v608, %v610
    %vm614 = vc.u32 %v608, %v610
    %v615 = vadd.s32 %v611, 1
    %v616 = vsel %vm614, %v615, %v611
    %v617 = vadd.s32 %v612, %v616
    %v618 = vadd.s32 %v617, 536870912
    %v619 = vshrl.u32 %v618, 30
    %v620 = vshll.u32 %v619, 30
    %v621 = vsub.s32 %v617, %v620
    %vm622 = vcmp.lt.s32.totalorder %v621, 0
    %v623 = vsub.s32 0, %v621
    %v624 = vsel %vm622, %v623, %v621
    %v625 = vclz %v624
    %v626 = vsub.s32 %v625, 2
    %vm627 = vcmp.gt.s32.totalorder 0, %v626
    %v628 = vsel %vm627, 0, %v626
    %v629 = vsub.s32 32, %v628
    %v630 = vshll.u32 %v621, %v628
    %v631 = vshrl.u32 %v613, %v629
    %v632 = vor.u32 %v630, %v631
    %v633 = vsub.s32 4294967266, %v628
    %v634 = vadd.s32 %v633, 127
    %v635 = vshll.u32 %v634, 23
    %v636 = vor.u32 4788187, %v635
    %v637 = vand.u32 2147483647, %v636
    %v639 = vcvt.s32.f32 %v632
    %v640 = vmul.f32 %v639, %v637
    %v641 = vxor.u32 %v640, 2147483648
    %v642 = vsel %vm559, %v641, %v640
    %v643 = vsub.s32 4, %v619
    %v644 = vsel %vm559, %v643, %v619
    %v645 = vsel %vm558, %v137, %v642
    %v646 = vsel %vm558, 0, %v644
    %v647 = vcosq.f32.pop %v645
    %v648 = vsinq.f32.pop %v645
    %vm649 = vweird.f32 %v137
    %v650 = vand.u32 %v646, 3
    %vm651 = vcmp.lt.s32.totalorder %v650, 2
    %vm652 = vcmp.eq.s32.totalorder %v650, 0
    %v653 = vxor.u32 %v648, 2147483648
    %v654 = vsel %vm652, %v647, %v653
    %vm655 = vcmp.eq.s32.totalorder %v650, 2
    %v656 = vxor.u32 %v647, 2147483648
    %v657 = vsel %vm655, %v656, %v648
    %v658 = vsel %vm651, %v654, %v657
    %v659 = vsel %vm649, nan, %v658
    %v660 = vand.u32 2147483647, %v138
    %vm661 = vcmp.le.f32.partialorder %v660, 0.7853982
    %vm662 = vcmp.lt.s32.totalorder %v138, 0
    %v663 = vand.u32 %v138, 2139095040
    %v664 = vshrl.u32 %v663, 23
    %v665 = vsub.s32 %v664, 127
    %v666 = vand.u32 2147483647, %v138
    %v667 = vand.u32 %v666, 8388607
    %v668 = vor.u32 %v667, 8388608
    %v669 = vsub.s32 0, %v668
    %v670 = vadd.s32 %v665, 1
    %vm671 = vcmp.gt.s32.totalorder %v670, 0
    %v672 = vsel %vm671, %v670, 0
    %v673 = vshrl.u32 %v672, 5
    %v674 = vand.u32 %v672, 31
    %v675 = vsub.s32 32, %v674
    %v676 = vshrl.u32 683565275, %v675
    %v677 = vshll.u32 683565275, %v674
    %v678 = vshrl.u32 2475754826, %v675
    %v679 = vor.u32 %v677, %v678
    %v680 = vshll.u32 2475754826, %v674
    %v681 = vshrl.u32 2131351028, %v675
    %v682 = vor.u32 %v680, %v681
    %v683 = vshll.u32 2131351028, %v674
    %v684 = vshrl.u32 2102212464, %v675
    %v685 = vor.u32 %v683, %v684
    %v686 = vshll.u32 2102212464, %v674
    %v687 = vshrl.u32 920167782, %v675
    %v688 = vor.u32 %v686, %v687
    %v689 = vshll.u32 920167782, %v674
    %v690 = vshrl.u32 1326507024, %v675
    %v691 = vor.u32 %v689, %v690
    %vm692 = vcmp.lt.s32.totalorder %v673, 1
    %vm693 = vcmp.lt.s32.totalorder %v673, 2
    %vm694 = vcmp.lt.s32.totalorder %v673, 3
    %vm695 = vcmp.lt.s32.totalorder %v673, 4
    %v696 = vsel %vm692, %v676, %v679
    %v697 = vsel %vm695, %v685, 2102212464
    %v698 = vsel %vm694, %v682, %v697
    %v699 = vsel %vm693, %v696, %v698
    %v700 = vsel %vm692, %v679, %v682
    %v701 = vsel %vm695, %v688, 920167782
    %v702 = vsel %vm694, %v685, %v701
    %v703 = vsel %vm693, %v700, %v702
    %v704 = vsel %vm692, %v682, %v685
    %v705 = vsel %vm695, %v691, 1326507024
    %v706 = vsel %vm694, %v688, %v705
    %v707 = vsel %vm693, %v704, %v706
    %v708 = vshll.u32 %v668, 8
    %v709 = vmul.u32.u64.compose %v708, %v707
    %v710 = vextract.low.u32 %v709
    %v711 = vextract.high.u32 %v709
    %v712 = vmul.u32.u64.compose %v708, %v703
    %v713 = vextract.low.u32 %v712
    %v714 = vextract.high.u32 %v712
    %v715 = vmul.u32 %v708, %v699
    %v716 = vadd.s32 %v711, %v713
    %vm717 = vc.u32 %v711, %v713
    %v718 = vadd.s32 %v714, 1
    %v719 = vsel %vm717, %v718, %v714
    %v720 = vadd.s32 %v715, %v719
    %v721 = vadd.s32 %v720, 536870912
    %v722 = vshrl.u32 %v721, 30
    %v723 = vshll.u32 %v722, 30
    %v724 = vsub.s32 %v720, %v723
    %vm725 = vcmp.lt.s32.totalorder %v724, 0
    %v726 = vsub.s32 0, %v724
    %v727 = vsel %vm725, %v726, %v724
    %v728 = vclz %v727
    %v729 = vsub.s32 %v728, 2
    %vm730 = vcmp.gt.s32.totalorder 0, %v729
    %v731 = vsel %vm730, 0, %v729
    %v732 = vsub.s32 32, %v731
    %v733 = vshll.u32 %v724, %v731
    %v734 = vshrl.u32 %v716, %v732
    %v735 = vor.u32 %v733, %v734
    %v736 = vsub.s32 4294967266, %v731
    %v737 = vadd.s32 %v736, 127
    %v738 = vshll.u32 %v737, 23
    %v739 = vor.u32 4788187, %v738
    %v740 = vand.u32 2147483647, %v739
    %v742 = vcvt.s32.f32 %v735
    %v743 = vmul.f32 %v742, %v740
    %v744 = vxor.u32 %v743, 2147483648
    %v745 = vsel %vm662, %v744, %v743
    %v746 = vsub.s32 4, %v722
    %v747 = vsel %vm662, %v746, %v722
    %v748 = vsel %vm661, %v138, %v745
    %v749 = vsel %vm661, 0, %v747
    %v750 = vcosq.f32.pop %v748
    %v751 = vsinq.f32.pop %v748
    %vm752 = vweird.f32 %v138
    %v753 = vand.u32 %v749, 3
    %vm754 = vcmp.lt.s32.totalorder %v753, 2
    %vm755 = vcmp.eq.s32.totalorder %v753, 0
    %v756 = vxor.u32 %v751, 2147483648
    %v757 = vsel %vm755, %v750, %v756
    %vm758 = vcmp.eq.s32.totalorder %v753, 2
    %v759 = vxor.u32 %v750, 2147483648
    %v760 = vsel %vm758, %v759, %v751
    %v761 = vsel %vm754, %v757, %v760
    %v762 = vsel %vm752, nan, %v761
    %v763 = vand.u32 2147483647, %v139
    %vm764 = vcmp.le.f32.partialorder %v763, 0.7853982
    %vm765 = vcmp.lt.s32.totalorder %v139, 0
    %v766 = vand.u32 %v139, 2139095040
    %v767 = vshrl.u32 %v766, 23
    %v768 = vsub.s32 %v767, 127
    %v769 = vand.u32 2147483647, %v139
    %v770 = vand.u32 %v769, 8388607
    %v771 = vor.u32 %v770, 8388608
    %v772 = vsub.s32 0, %v771
    %v773 = vadd.s32 %v768, 1
    %vm774 = vcmp.gt.s32.totalorder %v773, 0
    %v775 = vsel %vm774, %v773, 0
    %v776 = vshrl.u32 %v775, 5
    %v777 = vand.u32 %v775, 31
    %v778 = vsub.s32 32, %v777
    %v779 = vshrl.u32 683565275, %v778
    %v780 = vshll.u32 683565275, %v777
    %v781 = vshrl.u32 2475754826, %v778
    %v782 = vor.u32 %v780, %v781
    %v783 = vshll.u32 2475754826, %v777
    %v784 = vshrl.u32 2131351028, %v778
    %v785 = vor.u32 %v783, %v784
    %v786 = vshll.u32 2131351028, %v777
    %v787 = vshrl.u32 2102212464, %v778
    %v788 = vor.u32 %v786, %v787
    %v789 = vshll.u32 2102212464, %v777
    %v790 = vshrl.u32 920167782, %v778
    %v791 = vor.u32 %v789, %v790
    %v792 = vshll.u32 920167782, %v777
    %v793 = vshrl.u32 1326507024, %v778
    %v794 = vor.u32 %v792, %v793
    %vm795 = vcmp.lt.s32.totalorder %v776, 1
    %vm796 = vcmp.lt.s32.totalorder %v776, 2
    %vm797 = vcmp.lt.s32.totalorder %v776, 3
    %vm798 = vcmp.lt.s32.totalorder %v776, 4
    %v799 = vsel %vm795, %v779, %v782
    %v800 = vsel %vm798, %v788, 2102212464
    %v801 = vsel %vm797, %v785, %v800
    %v802 = vsel %vm796, %v799, %v801
    %v803 = vsel %vm795, %v782, %v785
    %v804 = vsel %vm798, %v791, 920167782
    %v805 = vsel %vm797, %v788, %v804
    %v806 = vsel %vm796, %v803, %v805
    %v807 = vsel %vm795, %v785, %v788
    %v808 = vsel %vm798, %v794, 1326507024
    %v809 = vsel %vm797, %v791, %v808
    %v810 = vsel %vm796, %v807, %v809
    %v811 = vshll.u32 %v771, 8
    %v812 = vmul.u32.u64.compose %v811, %v810
    %v813 = vextract.low.u32 %v812
    %v814 = vextract.high.u32 %v812
    %v815 = vmul.u32.u64.compose %v811, %v806
    %v816 = vextract.low.u32 %v815
    %v817 = vextract.high.u32 %v815
    %v818 = vmul.u32 %v811, %v802
    %v819 = vadd.s32 %v814, %v816
    %vm820 = vc.u32 %v814, %v816
    %v821 = vadd.s32 %v817, 1
    %v822 = vsel %vm820, %v821, %v817
    %v823 = vadd.s32 %v818, %v822
    %v824 = vadd.s32 %v823, 536870912
    %v825 = vshrl.u32 %v824, 30
    %v826 = vshll.u32 %v825, 30
    %v827 = vsub.s32 %v823, %v826
    %vm828 = vcmp.lt.s32.totalorder %v827, 0
    %v829 = vsub.s32 0, %v827
    %v830 = vsel %vm828, %v829, %v827
    %v831 = vclz %v830
    %v832 = vsub.s32 %v831, 2
    %vm833 = vcmp.gt.s32.totalorder 0, %v832
    %v834 = vsel %vm833, 0, %v832
    %v835 = vsub.s32 32, %v834
    %v836 = vshll.u32 %v827, %v834
    %v837 = vshrl.u32 %v819, %v835
    %v838 = vor.u32 %v836, %v837
    %v839 = vsub.s32 4294967266, %v834
    %v840 = vadd.s32 %v839, 127
    %v841 = vshll.u32 %v840, 23
    %v842 = vor.u32 4788187, %v841
    %v843 = vand.u32 2147483647, %v842
    %v845 = vcvt.s32.f32 %v838
    %v846 = vmul.f32 %v845, %v843
    %v847 = vxor.u32 %v846, 2147483648
    %v848 = vsel %vm765, %v847, %v846
    %v849 = vsub.s32 4, %v825
    %v850 = vsel %vm765, %v849, %v825
    %v851 = vsel %vm764, %v139, %v848
    %v852 = vsel %vm764, 0, %v850
    %v853 = vcosq.f32.pop %v851
    %v854 = vsinq.f32.pop %v851
    %vm855 = vweird.f32 %v139
    %v856 = vand.u32 %v852, 3
    %vm857 = vcmp.lt.s32.totalorder %v856, 2
    %vm858 = vcmp.eq.s32.totalorder %v856, 0
    %v859 = vxor.u32 %v854, 2147483648
    %v860 = vsel %vm858, %v853, %v859
    %vm861 = vcmp.eq.s32.totalorder %v856, 2
    %v862 = vxor.u32 %v853, 2147483648
    %v863 = vsel %vm861, %v862, %v854
    %v864 = vsel %vm857, %v860, %v863
    %v865 = vsel %vm855, nan, %v864
    %v866 = vand.u32 2147483647, %v140
    %vm867 = vcmp.le.f32.partialorder %v866, 0.7853982
    %vm868 = vcmp.lt.s32.totalorder %v140, 0
    %v869 = vand.u32 %v140, 2139095040
    %v870 = vshrl.u32 %v869, 23
    %v871 = vsub.s32 %v870, 127
    %v872 = vand.u32 2147483647, %v140
    %v873 = vand.u32 %v872, 8388607
    %v874 = vor.u32 %v873, 8388608
    %v875 = vsub.s32 0, %v874
    %v876 = vadd.s32 %v871, 1
    %vm877 = vcmp.gt.s32.totalorder %v876, 0
    %v878 = vsel %vm877, %v876, 0
    %v879 = vshrl.u32 %v878, 5
    %v880 = vand.u32 %v878, 31
    %v881 = vsub.s32 32, %v880
    %v882 = vshrl.u32 683565275, %v881
    %v883 = vshll.u32 683565275, %v880
    %v884 = vshrl.u32 2475754826, %v881
    %v885 = vor.u32 %v883, %v884
    %v886 = vshll.u32 2475754826, %v880
    %v887 = vshrl.u32 2131351028, %v881
    %v888 = vor.u32 %v886, %v887
    %v889 = vshll.u32 2131351028, %v880
    %v890 = vshrl.u32 2102212464, %v881
    %v891 = vor.u32 %v889, %v890
    %v892 = vshll.u32 2102212464, %v880
    %v893 = vshrl.u32 920167782, %v881
    %v894 = vor.u32 %v892, %v893
    %v895 = vshll.u32 920167782, %v880
    %v896 = vshrl.u32 1326507024, %v881
    %v897 = vor.u32 %v895, %v896
    %vm898 = vcmp.lt.s32.totalorder %v879, 1
    %vm899 = vcmp.lt.s32.totalorder %v879, 2
    %vm900 = vcmp.lt.s32.totalorder %v879, 3
    %vm901 = vcmp.lt.s32.totalorder %v879, 4
    %v902 = vsel %vm898, %v882, %v885
    %v903 = vsel %vm901, %v891, 2102212464
    %v904 = vsel %vm900, %v888, %v903
    %v905 = vsel %vm899, %v902, %v904
    %v906 = vsel %vm898, %v885, %v888
    %v907 = vsel %vm901, %v894, 920167782
    %v908 = vsel %vm900, %v891, %v907
    %v909 = vsel %vm899, %v906, %v908
    %v910 = vsel %vm898, %v888, %v891
    %v911 = vsel %vm901, %v897, 1326507024
    %v912 = vsel %vm900, %v894, %v911
    %v913 = vsel %vm899, %v910, %v912
    %v914 = vshll.u32 %v874, 8
    %v915 = vmul.u32.u64.compose %v914, %v913
    %v916 = vextract.low.u32 %v915
    %v917 = vextract.high.u32 %v915
    %v918 = vmul.u32.u64.compose %v914, %v909
    %v919 = vextract.low.u32 %v918
    %v920 = vextract.high.u32 %v918
    %v921 = vmul.u32 %v914, %v905
    %v922 = vadd.s32 %v917, %v919
    %vm923 = vc.u32 %v917, %v919
    %v924 = vadd.s32 %v920, 1
    %v925 = vsel %vm923, %v924, %v920
    %v926 = vadd.s32 %v921, %v925
    %v927 = vadd.s32 %v926, 536870912
    %v928 = vshrl.u32 %v927, 30
    %v929 = vshll.u32 %v928, 30
    %v930 = vsub.s32 %v926, %v929
    %vm931 = vcmp.lt.s32.totalorder %v930, 0
    %v932 = vsub.s32 0, %v930
    %v933 = vsel %vm931, %v932, %v930
    %v934 = vclz %v933
    %v935 = vsub.s32 %v934, 2
    %vm936 = vcmp.gt.s32.totalorder 0, %v935
    %v937 = vsel %vm936, 0, %v935
    %v938 = vsub.s32 32, %v937
    %v939 = vshll.u32 %v930, %v937
    %v940 = vshrl.u32 %v922, %v938
    %v941 = vor.u32 %v939, %v940
    %v942 = vsub.s32 4294967266, %v937
    %v943 = vadd.s32 %v942, 127
    %v944 = vshll.u32 %v943, 23
    %v945 = vor.u32 4788187, %v944
    %v946 = vand.u32 2147483647, %v945
    %v948 = vcvt.s32.f32 %v941
    %v949 = vmul.f32 %v948, %v946
    %v950 = vxor.u32 %v949, 2147483648
    %v951 = vsel %vm868, %v950, %v949
    %v952 = vsub.s32 4, %v928
    %v953 = vsel %vm868, %v952, %v928
    %v954 = vsel %vm867, %v140, %v951
    %v955 = vsel %vm867, 0, %v953
    %v956 = vcosq.f32.pop %v954
    %v957 = vsinq.f32.pop %v954
    %vm958 = vweird.f32 %v140
    %v959 = vand.u32 %v955, 3
    %vm960 = vcmp.lt.s32.totalorder %v959, 2
    %vm961 = vcmp.eq.s32.totalorder %v959, 0
    %v962 = vxor.u32 %v957, 2147483648
    %v963 = vsel %vm961, %v956, %v962
    %vm964 = vcmp.eq.s32.totalorder %v959, 2
    %v965 = vxor.u32 %v956, 2147483648
    %v966 = vsel %vm964, %v965, %v957
    %v967 = vsel %vm960, %v963, %v966
    %v968 = vsel %vm958, nan, %v967
    %vm969 = vcmask 1040384
    %v970 = vsel %vm969, %v118, %v122
    %v971 = vsel %vm969, %v119, %v123
    %v972 = vsel %vm969, %v120, %v124
    %v973 = vsel %vm969, %v121, %v125
    %v974 = vld [vmem:[#allocation5] sm:$0xff]
    %v975 = vld [vmem:[#allocation5 + $0x8] sm:$0xff]
    %v976 = vld [vmem:[#allocation5 + $0x10] sm:$0xff]
    %v977 = vld [vmem:[#allocation5 + $0x18] sm:$0xff]
    %v978 = vld [vmem:[#allocation5 + $0x20] sm:$0xff]
    %v979 = vld [vmem:[#allocation5 + $0x28] sm:$0xff]
    %v980 = vld [vmem:[#allocation5 + $0x30] sm:$0xff]
    %v981 = vld [vmem:[#allocation5 + $0x38] sm:$0xff]
    %v982 = vld [vmem:[#allocation5 + $0x40] sm:$0xff]
    %v983 = vld [vmem:[#allocation5 + $0x48] sm:$0xff]
    %v984 = vld [vmem:[#allocation5 + $0x50] sm:$0xff]
    %v985 = vld [vmem:[#allocation5 + $0x58] sm:$0xff]
    %v986 = vld [vmem:[#allocation5 + $0x60] sm:$0xff]
    %v987 = vld [vmem:[#allocation5 + $0x68] sm:$0xff]
    %v988 = vld [vmem:[#allocation5 + $0x70] sm:$0xff]
    %v989 = vld [vmem:[#allocation5 + $0x78] sm:$0xff]
    %v990 = vld [vmem:[#allocation5 + $0x80] sm:$0xff]
    %992 = vset.pattern.permute.xlu0 64
    %993 = vperm.xlu0 %992, %v974
    %v994 = vpop.permute.xlu0 %993
    %997 = vset.pattern.permute.xlu0 64
    %998 = vperm.xlu0 %997, %v975
    %v999 = vpop.permute.xlu0 %998
    %1002 = vset.pattern.permute.xlu0 64
    %1003 = vperm.xlu0 %1002, %v976
    %v1004 = vpop.permute.xlu0 %1003
    %1007 = vset.pattern.permute.xlu0 64
    %1008 = vperm.xlu0 %1007, %v977
    %v1009 = vpop.permute.xlu0 %1008
    %vm1011 = vcmask 146432
    %v1012 = vsel %vm1011, %v974, 0
    %v1014 = vsel %vm1011, %v975, 0
    %v1016 = vsel %vm1011, %v976, 0
    %v1018 = vsel %vm1011, %v977, 0
    %vm1020 = vcmask 1041408
    %v1022 = vsel %vm1020, %v970, 0
    %v1025 = vsel %vm1020, %v971, 0
    %v1028 = vsel %vm1020, %v972, 0
    %v1031 = vsel %vm1020, %v973, 0
    %1033 = vmatprep.subr.mxu0 %v348
    %1034 = vmatpush1.msra.mxu0 %v244
    %1035 = vmatprep.subr.mxu0 %v762
    %1036 = vmatpush1.msra.mxu0 %v659
    %1037 = vmatprep.subr.mxu0 %v1025
    %1038 = vmatpush1.msra.mxu0 %v1022
    %1039 = vmatprep.subr.mxu0 0.0
    %1040 = vmatpush1.msra.mxu0 0.0
    %1041 = vmatprep.subr.mxu0 0.0
    %1042 = vmatpush1.msra.mxu0 0.0
    %1043 = vmatprep.subr.mxu0 0.0
    %1044 = vmatpush1.msra.mxu0 0.0
    %1045 = vmatprep.subr.mxu0 0.0
    %1046 = vmatpush1.msra.mxu0 0.0
    %1047 = vmatprep.subr.mxu0 0.0
    %1048 = vmatpush1.msra.mxu0 0.0
    %1049 = vmatprep.subr.mxu0 0.0
    %1050 = vmatpush1.msra.mxu0 0.0
    %1051 = vmatprep.subr.mxu0 0.0
    %1052 = vmatpush1.msra.mxu0 0.0
    %1053 = vmatprep.subr.mxu0 0.0
    %1054 = vmatpush1.msra.mxu0 0.0
    %1055 = vmatprep.subr.mxu0 0.0
    %1056 = vmatpush1.msra.mxu0 0.0
    %1057 = vmatprep.subr.mxu0 0.0
    %1058 = vmatpush1.msra.mxu0 0.0
    %1059 = vmatprep.subr.mxu0 0.0
    %1060 = vmatpush1.msra.mxu0 0.0
    %1061 = vmatprep.subr.mxu0 0.0
    %1062 = vmatpush1.msra.mxu0 0.0
    %1063 = vmatprep.subr.mxu0 0.0
    %1064 = vmatpush1.msra.mxu0 0.0
    %1065 = vmatprep.subr.mxu0 0.0
    %1066 = vmatpush1.msra.mxu0 0.0
    %1067 = vmatprep.subr.mxu0 0.0
    %1068 = vmatpush1.msra.mxu0 0.0
    %1069 = vmatprep.subr.mxu0 0.0
    %1070 = vmatpush1.msra.mxu0 0.0
    %1071 = vmatprep.subr.mxu0 0.0
    %1072 = vmatpush1.msra.mxu0 0.0
    %1073 = vmatprep.subr.mxu0 0.0
    %1074 = vmatpush1.msra.mxu0 0.0
    %1075 = vmatprep.subr.mxu0 0.0
    %1076 = vmatpush1.msra.mxu0 0.0
    %1077 = vmatprep.subr.mxu0 0.0
    %1078 = vmatpush1.msra.mxu0 0.0
    %1079 = vmatprep.subr.mxu0 0.0
    %1080 = vmatpush1.msra.mxu0 0.0
    %1081 = vmatprep.subr.mxu0 0.0
    %1082 = vmatpush1.msra.mxu0 0.0
    %1083 = vmatprep.subr.mxu0 0.0
    %1084 = vmatpush1.msra.mxu0 0.0
    %1085 = vmatprep.subr.mxu0 0.0
    %1086 = vmatpush1.msra.mxu0 0.0
    %1087 = vmatprep.subr.mxu0 0.0
    %1088 = vmatpush1.msra.mxu0 0.0
    %1089 = vmatprep.subr.mxu0 0.0
    %1090 = vmatpush1.msra.mxu0 0.0
    %1091 = vmatprep.subr.mxu0 0.0
    %1092 = vmatpush1.msra.mxu0 0.0
    %1093 = vmatprep.subr.mxu0 0.0
    %1094 = vmatpush1.msra.mxu0 0.0
    %1095 = vmatprep.subr.mxu0 0.0
    %1096 = vmatpush1.msra.mxu0 0.0
    %1097 = vmatprep.mubr.f32.mxu0 0.0
    %1098 = vmatmul.mubr.f32.gmra.mrb[0].mxu0 %v1012
    %v1099 = vpop.f32.mrb[0].mxu0
    %v1100 = vadd.f32 %v994, %v1099
    %v1101 = vpop.f32.mrb[0].mxu0
    %v1102 = vadd.f32 %v994, %v1101
    %1103 = vmatprep.mubr.f32.mxu0 0.0
    %1104 = vmatmul.mubr.f32.gmra.mrb[0].mxu0 %v1014
    %v1105 = vpop.f32.mrb[0].mxu0
    %v1106 = vadd.f32 %v999, %v1105
    %v1107 = vpop.f32.mrb[0].mxu0
    %v1108 = vadd.f32 %v999, %v1107
    %1109 = vmatprep.mubr.f32.mxu0 0.0
    %1110 = vmatmul.mubr.f32.gmra.mrb[0].mxu0 %v1016
    %v1111 = vpop.f32.mrb[0].mxu0
    %v1112 = vadd.f32 %v1004, %v1111
    %v1113 = vpop.f32.mrb[0].mxu0
    %v1114 = vadd.f32 %v1004, %v1113
    %1115 = vmatprep.mubr.f32.mxu0 0.0
    %1116 = vmatmul.mubr.f32.gmra.mrb[0].mxu0 %v1018
    %v1117 = vpop.f32.mrb[0].mxu0
    %v1118 = vadd.f32 %v1009, %v1117
    %v1119 = vpop.f32.mrb[0].mxu0
    %v1120 = vadd.f32 %v1009, %v1119
    %1121 = vdwg.mxu0
    %1122 = vmatprep.subr.mxu0 %v556
    %1123 = vmatpush1.msra.mxu0 %v452
    %1124 = vmatprep.subr.mxu0 %v968
    %1125 = vmatpush1.msra.mxu0 %v865
    %1126 = vmatprep.subr.mxu0 %v1031
    %1127 = vmatpush1.msra.mxu0 %v1028
    %1128 = vmatprep.subr.mxu0 0.0
    %1129 = vmatpush1.msra.mxu0 0.0
    %1130 = vmatprep.subr.mxu0 0.0
    %1131 = vmatpush1.msra.mxu0 0.0
    %1132 = vmatprep.subr.mxu0 0.0
    %1133 = vmatpush1.msra.mxu0 0.0
    %1134 = vmatprep.subr.mxu0 0.0
    %1135 = vmatpush1.msra.mxu0 0.0
    %1136 = vmatprep.subr.mxu0 0.0
    %1137 = vmatpush1.msra.mxu0 0.0
    %1138 = vmatprep.subr.mxu0 0.0
    %1139 = vmatpush1.msra.mxu0 0.0
    %1140 = vmatprep.subr.mxu0 0.0
    %1141 = vmatpush1.msra.mxu0 0.0
    %1142 = vmatprep.subr.mxu0 0.0
    %1143 = vmatpush1.msra.mxu0 0.0
    %1144 = vmatprep.subr.mxu0 0.0
    %1145 = vmatpush1.msra.mxu0 0.0
    %1146 = vmatprep.subr.mxu0 0.0
    %1147 = vmatpush1.msra.mxu0 0.0
    %1148 = vmatprep.subr.mxu0 0.0
    %1149 = vmatpush1.msra.mxu0 0.0
    %1150 = vmatprep.subr.mxu0 0.0
    %1151 = vmatpush1.msra.mxu0 0.0
    %1152 = vmatprep.subr.mxu0 0.0
    %1153 = vmatpush1.msra.mxu0 0.0
    %1154 = vmatprep.subr.mxu0 0.0
    %1155 = vmatpush1.msra.mxu0 0.0
    %1156 = vmatprep.subr.mxu0 0.0
    %1157 = vmatpush1.msra.mxu0 0.0
    %1158 = vmatprep.subr.mxu0 0.0
    %1159 = vmatpush1.msra.mxu0 0.0
    %1160 = vmatprep.subr.mxu0 0.0
    %1161 = vmatpush1.msra.mxu0 0.0
    %1162 = vmatprep.subr.mxu0 0.0
    %1163 = vmatpush1.msra.mxu0 0.0
    %1164 = vmatprep.subr.mxu0 0.0
    %1165 = vmatpush1.msra.mxu0 0.0
    %1166 = vmatprep.subr.mxu0 0.0
    %1167 = vmatpush1.msra.mxu0 0.0
    %1168 = vmatprep.subr.mxu0 0.0
    %1169 = vmatpush1.msra.mxu0 0.0
    %1170 = vmatprep.subr.mxu0 0.0
    %1171 = vmatpush1.msra.mxu0 0.0
    %1172 = vmatprep.subr.mxu0 0.0
    %1173 = vmatpush1.msra.mxu0 0.0
    %1174 = vmatprep.subr.mxu0 0.0
    %1175 = vmatpush1.msra.mxu0 0.0
    %1176 = vmatprep.subr.mxu0 0.0
    %1177 = vmatpush1.msra.mxu0 0.0
    %1178 = vmatprep.subr.mxu0 0.0
    %1179 = vmatpush1.msra.mxu0 0.0
    %1180 = vmatprep.subr.mxu0 0.0
    %1181 = vmatpush1.msra.mxu0 0.0
    %1182 = vmatprep.subr.mxu0 0.0
    %1183 = vmatpush1.msra.mxu0 0.0
    %1184 = vmatprep.subr.mxu0 0.0
    %1185 = vmatpush1.msra.mxu0 0.0
    %1186 = vmatprep.mubr.f32.mxu0 0.0
    %1187 = vmatmul.mubr.f32.gmra.mrb[0].mxu0 %v1012
    %v1188 = vpop.f32.mrb[0].mxu0
    %v1189 = vadd.f32 %v994, %v1188
    %v1190 = vpop.f32.mrb[0].mxu0
    %v1191 = vadd.f32 %v994, %v1190
    %1192 = vmatprep.mubr.f32.mxu0 0.0
    %1193 = vmatmul.mubr.f32.gmra.mrb[0].mxu0 %v1014
    %v1194 = vpop.f32.mrb[0].mxu0
    %v1195 = vadd.f32 %v999, %v1194
    %v1196 = vpop.f32.mrb[0].mxu0
    %v1197 = vadd.f32 %v999, %v1196
    %1198 = vmatprep.mubr.f32.mxu0 0.0
    %1199 = vmatmul.mubr.f32.gmra.mrb[0].mxu0 %v1016
    %v1200 = vpop.f32.mrb[0].mxu0
    %v1201 = vadd.f32 %v1004, %v1200
    %v1202 = vpop.f32.mrb[0].mxu0
    %v1203 = vadd.f32 %v1004, %v1202
    %1204 = vmatprep.mubr.f32.mxu0 0.0
    %1205 = vmatmul.mubr.f32.gmra.mrb[0].mxu0 %v1018
    %v1206 = vpop.f32.mrb[0].mxu0
    %v1207 = vadd.f32 %v1009, %v1206
    %v1208 = vpop.f32.mrb[0].mxu0
    %v1209 = vadd.f32 %v1009, %v1208
    %1210 = vdwg.mxu0
    %v1211 = vmax.f32 %v1100, 0.0
    %v1212 = vmax.f32 %v1102, 0.0
    %v1213 = vmax.f32 %v1189, 0.0
    %v1214 = vmax.f32 %v1191, 0.0
    %v1215 = vmax.f32 %v1106, 0.0
    %v1216 = vmax.f32 %v1108, 0.0
    %v1217 = vmax.f32 %v1195, 0.0
    %v1218 = vmax.f32 %v1197, 0.0
    %v1219 = vmax.f32 %v1112, 0.0
    %v1220 = vmax.f32 %v1114, 0.0
    %v1221 = vmax.f32 %v1201, 0.0
    %v1222 = vmax.f32 %v1203, 0.0
    %v1223 = vmax.f32 %v1118, 0.0
    %v1224 = vmax.f32 %v1120, 0.0
    %v1225 = vmax.f32 %v1207, 0.0
    %v1226 = vmax.f32 %v1209, 0.0
    %1228 = vset.pattern.permute.xlu0 64
    %1229 = vperm.xlu0 %1228, %v978
    %v1230 = vpop.permute.xlu0 %1229
    %1233 = vset.pattern.permute.xlu0 64
    %1234 = vperm.xlu0 %1233, %v979
    %v1235 = vpop.permute.xlu0 %1234
    %1238 = vset.pattern.permute.xlu0 64
    %1239 = vperm.xlu0 %1238, %v980
    %v1240 = vpop.permute.xlu0 %1239
    %1243 = vset.pattern.permute.xlu0 64
    %1244 = vperm.xlu0 %1243, %v981
    %v1245 = vpop.permute.xlu0 %1244
    %vm1247 = vcmask 261120
    %v1248 = vsel %vm1247, %v978, 0
    %v1250 = vsel %vm1247, %v979, 0
    %v1252 = vsel %vm1247, %v980, 0
    %v1254 = vsel %vm1247, %v981, 0
    %1256 = vmatprep.subr.mxu0 %v1212
    %1257 = vmatpush1.msra.mxu0 %v1211
    %1258 = vmatprep.subr.mxu0 %v1216
    %1259 = vmatpush1.msra.mxu0 %v1215
    %1260 = vmatprep.subr.mxu0 %v1220
    %1261 = vmatpush1.msra.mxu0 %v1219
    %1262 = vmatprep.subr.mxu0 %v1224
    %1263 = vmatpush1.msra.mxu0 %v1223
    %1264 = vmatprep.subr.mxu0 0.0
    %1265 = vmatpush1.msra.mxu0 0.0
    %1266 = vmatprep.subr.mxu0 0.0
    %1267 = vmatpush1.msra.mxu0 0.0
    %1268 = vmatprep.subr.mxu0 0.0
    %1269 = vmatpush1.msra.mxu0 0.0
    %1270 = vmatprep.subr.mxu0 0.0
    %1271 = vmatpush1.msra.mxu0 0.0
    %1272 = vmatprep.subr.mxu0 0.0
    %1273 = vmatpush1.msra.mxu0 0.0
    %1274 = vmatprep.subr.mxu0 0.0
    %1275 = vmatpush1.msra.mxu0 0.0
    %1276 = vmatprep.subr.mxu0 0.0
    %1277 = vmatpush1.msra.mxu0 0.0
    %1278 = vmatprep.subr.mxu0 0.0
    %1279 = vmatpush1.msra.mxu0 0.0
    %1280 = vmatprep.subr.mxu0 0.0
    %1281 = vmatpush1.msra.mxu0 0.0
    %1282 = vmatprep.subr.mxu0 0.0
    %1283 = vmatpush1.msra.mxu0 0.0
    %1284 = vmatprep.subr.mxu0 0.0
    %1285 = vmatpush1.msra.mxu0 0.0
    %1286 = vmatprep.subr.mxu0 0.0
    %1287 = vmatpush1.msra.mxu0 0.0
    %1288 = vmatprep.subr.mxu0 0.0
    %1289 = vmatpush1.msra.mxu0 0.0
    %1290 = vmatprep.subr.mxu0 0.0
    %1291 = vmatpush1.msra.mxu0 0.0
    %1292 = vmatprep.subr.mxu0 0.0
    %1293 = vmatpush1.msra.mxu0 0.0
    %1294 = vmatprep.subr.mxu0 0.0
    %1295 = vmatpush1.msra.mxu0 0.0
    %1296 = vmatprep.subr.mxu0 0.0
    %1297 = vmatpush1.msra.mxu0 0.0
    %1298 = vmatprep.subr.mxu0 0.0
    %1299 = vmatpush1.msra.mxu0 0.0
    %1300 = vmatprep.subr.mxu0 0.0
    %1301 = vmatpush1.msra.mxu0 0.0
    %1302 = vmatprep.subr.mxu0 0.0
    %1303 = vmatpush1.msra.mxu0 0.0
    %1304 = vmatprep.subr.mxu0 0.0
    %1305 = vmatpush1.msra.mxu0 0.0
    %1306 = vmatprep.subr.mxu0 0.0
    %1307 = vmatpush1.msra.mxu0 0.0
    %1308 = vmatprep.subr.mxu0 0.0
    %1309 = vmatpush1.msra.mxu0 0.0
    %1310 = vmatprep.subr.mxu0 0.0
    %1311 = vmatpush1.msra.mxu0 0.0
    %1312 = vmatprep.subr.mxu0 0.0
    %1313 = vmatpush1.msra.mxu0 0.0
    %1314 = vmatprep.subr.mxu0 0.0
    %1315 = vmatpush1.msra.mxu0 0.0
    %1316 = vmatprep.subr.mxu0 0.0
    %1317 = vmatpush1.msra.mxu0 0.0
    %1318 = vmatprep.subr.mxu0 0.0
    %1319 = vmatpush1.msra.mxu0 0.0
    %1320 = vmatprep.mubr.f32.mxu0 0.0
    %1321 = vmatmul.mubr.f32.gmra.mrb[0].mxu0 %v1248
    %v1322 = vpop.f32.mrb[0].mxu0
    %v1323 = vadd.f32 %v1230, %v1322
    %v1324 = vpop.f32.mrb[0].mxu0
    %v1325 = vadd.f32 %v1230, %v1324
    %1326 = vmatprep.mubr.f32.mxu0 0.0
    %1327 = vmatmul.mubr.f32.gmra.mrb[0].mxu0 %v1250
    %v1328 = vpop.f32.mrb[0].mxu0
    %v1329 = vadd.f32 %v1235, %v1328
    %v1330 = vpop.f32.mrb[0].mxu0
    %v1331 = vadd.f32 %v1235, %v1330
    %1332 = vmatprep.mubr.f32.mxu0 0.0
    %1333 = vmatmul.mubr.f32.gmra.mrb[0].mxu0 %v1252
    %v1334 = vpop.f32.mrb[0].mxu0
    %v1335 = vadd.f32 %v1240, %v1334
    %v1336 = vpop.f32.mrb[0].mxu0
    %v1337 = vadd.f32 %v1240, %v1336
    %1338 = vmatprep.mubr.f32.mxu0 0.0
    %1339 = vmatmul.mubr.f32.gmra.mrb[0].mxu0 %v1254
    %v1340 = vpop.f32.mrb[0].mxu0
    %v1341 = vadd.f32 %v1245, %v1340
    %v1342 = vpop.f32.mrb[0].mxu0
    %v1343 = vadd.f32 %v1245, %v1342
    %1344 = vdwg.mxu0
    %1345 = vmatprep.subr.mxu0 %v1214
    %1346 = vmatpush1.msra.mxu0 %v1213
    %1347 = vmatprep.subr.mxu0 %v1218
    %1348 = vmatpush1.msra.mxu0 %v1217
    %1349 = vmatprep.subr.mxu0 %v1222
    %1350 = vmatpush1.msra.mxu0 %v1221
    %1351 = vmatprep.subr.mxu0 %v1226
    %1352 = vmatpush1.msra.mxu0 %v1225
    %1353 = vmatprep.subr.mxu0 0.0
    %1354 = vmatpush1.msra.mxu0 0.0
    %1355 = vmatprep.subr.mxu0 0.0
    %1356 = vmatpush1.msra.mxu0 0.0
    %1357 = vmatprep.subr.mxu0 0.0
    %1358 = vmatpush1.msra.mxu0 0.0
    %1359 = vmatprep.subr.mxu0 0.0
    %1360 = vmatpush1.msra.mxu0 0.0
    %1361 = vmatprep.subr.mxu0 0.0
    %1362 = vmatpush1.msra.mxu0 0.0
    %1363 = vmatprep.subr.mxu0 0.0
    %1364 = vmatpush1.msra.mxu0 0.0
    %1365 = vmatprep.subr.mxu0 0.0
    %1366 = vmatpush1.msra.mxu0 0.0
    %1367 = vmatprep.subr.mxu0 0.0
    %1368 = vmatpush1.msra.mxu0 0.0
    %1369 = vmatprep.subr.mxu0 0.0
    %1370 = vmatpush1.msra.mxu0 0.0
    %1371 = vmatprep.subr.mxu0 0.0
    %1372 = vmatpush1.msra.mxu0 0.0
    %1373 = vmatprep.subr.mxu0 0.0
    %1374 = vmatpush1.msra.mxu0 0.0
    %1375 = vmatprep.subr.mxu0 0.0
    %1376 = vmatpush1.msra.mxu0 0.0
    %1377 = vmatprep.subr.mxu0 0.0
    %1378 = vmatpush1.msra.mxu0 0.0
    %1379 = vmatprep.subr.mxu0 0.0
    %1380 = vmatpush1.msra.mxu0 0.0
    %1381 = vmatprep.subr.mxu0 0.0
    %1382 = vmatpush1.msra.mxu0 0.0
    %1383 = vmatprep.subr.mxu0 0.0
    %1384 = vmatpush1.msra.mxu0 0.0
    %1385 = vmatprep.subr.mxu0 0.0
    %1386 = vmatpush1.msra.mxu0 0.0
    %1387 = vmatprep.subr.mxu0 0.0
    %1388 = vmatpush1.msra.mxu0 0.0
    %1389 = vmatprep.subr.mxu0 0.0
    %1390 = vmatpush1.msra.mxu0 0.0
    %1391 = vmatprep.subr.mxu0 0.0
    %1392 = vmatpush1.msra.mxu0 0.0
    %1393 = vmatprep.subr.mxu0 0.0
    %1394 = vmatpush1.msra.mxu0 0.0
    %1395 = vmatprep.subr.mxu0 0.0
    %1396 = vmatpush1.msra.mxu0 0.0
    %1397 = vmatprep.subr.mxu0 0.0
    %1398 = vmatpush1.msra.mxu0 0.0
    %1399 = vmatprep.subr.mxu0 0.0
    %1400 = vmatpush1.msra.mxu0 0.0
    %1401 = vmatprep.subr.mxu0 0.0
    %1402 = vmatpush1.msra.mxu0 0.0
    %1403 = vmatprep.subr.mxu0 0.0
    %1404 = vmatpush1.msra.mxu0 0.0
    %1405 = vmatprep.subr.mxu0 0.0
    %1406 = vmatpush1.msra.mxu0 0.0
    %1407 = vmatprep.subr.mxu0 0.0
    %1408 = vmatpush1.msra.mxu0 0.0
    %1409 = vmatprep.mubr.f32.mxu0 0.0
    %1410 = vmatmul.mubr.f32.gmra.mrb[0].mxu0 %v1248
    %v1411 = vpop.f32.mrb[0].mxu0
    %v1412 = vadd.f32 %v1230, %v1411
    %v1413 = vpop.f32.mrb[0].mxu0
    %v1414 = vadd.f32 %v1230, %v1413
    %1415 = vmatprep.mubr.f32.mxu0 0.0
    %1416 = vmatmul.mubr.f32.gmra.mrb[0].mxu0 %v1250
    %v1417 = vpop.f32.mrb[0].mxu0
    %v1418 = vadd.f32 %v1235, %v1417
    %v1419 = vpop.f32.mrb[0].mxu0
    %v1420 = vadd.f32 %v1235, %v1419
    %1421 = vmatprep.mubr.f32.mxu0 0.0
    %1422 = vmatmul.mubr.f32.gmra.mrb[0].mxu0 %v1252
    %v1423 = vpop.f32.mrb[0].mxu0
    %v1424 = vadd.f32 %v1240, %v1423
    %v1425 = vpop.f32.mrb[0].mxu0
    %v1426 = vadd.f32 %v1240, %v1425
    %1427 = vmatprep.mubr.f32.mxu0 0.0
    %1428 = vmatmul.mubr.f32.gmra.mrb[0].mxu0 %v1254
    %v1429 = vpop.f32.mrb[0].mxu0
    %v1430 = vadd.f32 %v1245, %v1429
    %v1431 = vpop.f32.mrb[0].mxu0
    %v1432 = vadd.f32 %v1245, %v1431
    %1433 = vdwg.mxu0
    %v1434 = vmax.f32 %v1323, 0.0
    %v1435 = vmax.f32 %v1325, 0.0
    %v1436 = vmax.f32 %v1412, 0.0
    %v1437 = vmax.f32 %v1414, 0.0
    %v1438 = vmax.f32 %v1329, 0.0
    %v1439 = vmax.f32 %v1331, 0.0
    %v1440 = vmax.f32 %v1418, 0.0
    %v1441 = vmax.f32 %v1420, 0.0
    %v1442 = vmax.f32 %v1335, 0.0
    %v1443 = vmax.f32 %v1337, 0.0
    %v1444 = vmax.f32 %v1424, 0.0
    %v1445 = vmax.f32 %v1426, 0.0
    %v1446 = vmax.f32 %v1341, 0.0
    %v1447 = vmax.f32 %v1343, 0.0
    %v1448 = vmax.f32 %v1430, 0.0
    %v1449 = vmax.f32 %v1432, 0.0
    %v1451 = vsel %vm1011, %v986, 0
    %v1454 = vsel %vm1011, %v987, 0
    %v1457 = vsel %vm1011, %v988, 0
    %v1460 = vsel %vm1011, %v989, 0
    %1462 = vmatprep.subr.mxu0 %v348
    %1463 = vmatpush1.msra.mxu0 %v244
    %1464 = vmatprep.subr.mxu0 %v762
    %1465 = vmatpush1.msra.mxu0 %v659
    %1466 = vmatprep.subr.mxu0 %v1025
    %1467 = vmatpush1.msra.mxu0 %v1022
    %1468 = vmatprep.subr.mxu0 0.0
    %1469 = vmatpush1.msra.mxu0 0.0
    %1470 = vmatprep.subr.mxu0 0.0
    %1471 = vmatpush1.msra.mxu0 0.0
    %1472 = vmatprep.subr.mxu0 0.0
    %1473 = vmatpush1.msra.mxu0 0.0
    %1474 = vmatprep.subr.mxu0 0.0
    %1475 = vmatpush1.msra.mxu0 0.0
    %1476 = vmatprep.subr.mxu0 0.0
    %1477 = vmatpush1.msra.mxu0 0.0
    %1478 = vmatprep.subr.mxu0 0.0
    %1479 = vmatpush1.msra.mxu0 0.0
    %1480 = vmatprep.subr.mxu0 0.0
    %1481 = vmatpush1.msra.mxu0 0.0
    %1482 = vmatprep.subr.mxu0 0.0
    %1483 = vmatpush1.msra.mxu0 0.0
    %1484 = vmatprep.subr.mxu0 0.0
    %1485 = vmatpush1.msra.mxu0 0.0
    %1486 = vmatprep.subr.mxu0 0.0
    %1487 = vmatpush1.msra.mxu0 0.0
    %1488 = vmatprep.subr.mxu0 0.0
    %1489 = vmatpush1.msra.mxu0 0.0
    %1490 = vmatprep.subr.mxu0 0.0
    %1491 = vmatpush1.msra.mxu0 0.0
    %1492 = vmatprep.subr.mxu0 0.0
    %1493 = vmatpush1.msra.mxu0 0.0
    %1494 = vmatprep.subr.mxu0 0.0
    %1495 = vmatpush1.msra.mxu0 0.0
    %1496 = vmatprep.subr.mxu0 0.0
    %1497 = vmatpush1.msra.mxu0 0.0
    %1498 = vmatprep.subr.mxu0 0.0
    %1499 = vmatpush1.msra.mxu0 0.0
    %1500 = vmatprep.subr.mxu0 0.0
    %1501 = vmatpush1.msra.mxu0 0.0
    %1502 = vmatprep.subr.mxu0 0.0
    %1503 = vmatpush1.msra.mxu0 0.0
    %1504 = vmatprep.subr.mxu0 0.0
    %1505 = vmatpush1.msra.mxu0 0.0
    %1506 = vmatprep.subr.mxu0 0.0
    %1507 = vmatpush1.msra.mxu0 0.0
    %1508 = vmatprep.subr.mxu0 0.0
    %1509 = vmatpush1.msra.mxu0 0.0
    %1510 = vmatprep.subr.mxu0 0.0
    %1511 = vmatpush1.msra.mxu0 0.0
    %1512 = vmatprep.subr.mxu0 0.0
    %1513 = vmatpush1.msra.mxu0 0.0
    %1514 = vmatprep.subr.mxu0 0.0
    %1515 = vmatpush1.msra.mxu0 0.0
    %1516 = vmatprep.subr.mxu0 0.0
    %1517 = vmatpush1.msra.mxu0 0.0
    %1518 = vmatprep.subr.mxu0 0.0
    %1519 = vmatpush1.msra.mxu0 0.0
    %1520 = vmatprep.subr.mxu0 0.0
    %1521 = vmatpush1.msra.mxu0 0.0
    %1522 = vmatprep.subr.mxu0 0.0
    %1523 = vmatpush1.msra.mxu0 0.0
    %1524 = vmatprep.subr.mxu0 0.0
    %1525 = vmatpush1.msra.mxu0 0.0
    %1526 = vmatprep.mubr.f32.mxu0 0.0
    %1527 = vmatmul.mubr.f32.gmra.mrb[0].mxu0 %v1451
    %v1528 = vpop.f32.mrb[0].mxu0
    %v1529 = vadd.f32 0.0, %v1528
    %v1530 = vpop.f32.mrb[0].mxu0
    %v1531 = vadd.f32 0.0, %v1530
    %1532 = vmatprep.mubr.f32.mxu0 0.0
    %1533 = vmatmul.mubr.f32.gmra.mrb[0].mxu0 %v1454
    %v1534 = vpop.f32.mrb[0].mxu0
    %v1535 = vadd.f32 0.0, %v1534
    %v1536 = vpop.f32.mrb[0].mxu0
    %v1537 = vadd.f32 0.0, %v1536
    %1538 = vmatprep.mubr.f32.mxu0 0.0
    %1539 = vmatmul.mubr.f32.gmra.mrb[0].mxu0 %v1457
    %v1540 = vpop.f32.mrb[0].mxu0
    %v1541 = vadd.f32 0.0, %v1540
    %v1542 = vpop.f32.mrb[0].mxu0
    %v1543 = vadd.f32 0.0, %v1542
    %1544 = vmatprep.mubr.f32.mxu0 0.0
    %1545 = vmatmul.mubr.f32.gmra.mrb[0].mxu0 %v1460
    %v1546 = vpop.f32.mrb[0].mxu0
    %v1547 = vadd.f32 0.0, %v1546
    %v1548 = vpop.f32.mrb[0].mxu0
    %v1549 = vadd.f32 0.0, %v1548
    %1550 = vdwg.mxu0
    %1551 = vmatprep.subr.mxu0 %v556
    %1552 = vmatpush1.msra.mxu0 %v452
    %1553 = vmatprep.subr.mxu0 %v968
    %1554 = vmatpush1.msra.mxu0 %v865
    %1555 = vmatprep.subr.mxu0 %v1031
    %1556 = vmatpush1.msra.mxu0 %v1028
    %1557 = vmatprep.subr.mxu0 0.0
    %1558 = vmatpush1.msra.mxu0 0.0
    %1559 = vmatprep.subr.mxu0 0.0
    %1560 = vmatpush1.msra.mxu0 0.0
    %1561 = vmatprep.subr.mxu0 0.0
    %1562 = vmatpush1.msra.mxu0 0.0
    %1563 = vmatprep.subr.mxu0 0.0
    %1564 = vmatpush1.msra.mxu0 0.0
    %1565 = vmatprep.subr.mxu0 0.0
    %1566 = vmatpush1.msra.mxu0 0.0
    %1567 = vmatprep.subr.mxu0 0.0
    %1568 = vmatpush1.msra.mxu0 0.0
    %1569 = vmatprep.subr.mxu0 0.0
    %1570 = vmatpush1.msra.mxu0 0.0
    %1571 = vmatprep.subr.mxu0 0.0
    %1572 = vmatpush1.msra.mxu0 0.0
    %1573 = vmatprep.subr.mxu0 0.0
    %1574 = vmatpush1.msra.mxu0 0.0
    %1575 = vmatprep.subr.mxu0 0.0
    %1576 = vmatpush1.msra.mxu0 0.0
    %1577 = vmatprep.subr.mxu0 0.0
    %1578 = vmatpush1.msra.mxu0 0.0
    %1579 = vmatprep.subr.mxu0 0.0
    %1580 = vmatpush1.msra.mxu0 0.0
    %1581 = vmatprep.subr.mxu0 0.0
    %1582 = vmatpush1.msra.mxu0 0.0
    %1583 = vmatprep.subr.mxu0 0.0
    %1584 = vmatpush1.msra.mxu0 0.0
    %1585 = vmatprep.subr.mxu0 0.0
    %1586 = vmatpush1.msra.mxu0 0.0
    %1587 = vmatprep.subr.mxu0 0.0
    %1588 = vmatpush1.msra.mxu0 0.0
    %1589 = vmatprep.subr.mxu0 0.0
    %1590 = vmatpush1.msra.mxu0 0.0
    %1591 = vmatprep.subr.mxu0 0.0
    %1592 = vmatpush1.msra.mxu0 0.0
    %1593 = vmatprep.subr.mxu0 0.0
    %1594 = vmatpush1.msra.mxu0 0.0
    %1595 = vmatprep.subr.mxu0 0.0
    %1596 = vmatpush1.msra.mxu0 0.0
    %1597 = vmatprep.subr.mxu0 0.0
    %1598 = vmatpush1.msra.mxu0 0.0
    %1599 = vmatprep.subr.mxu0 0.0
    %1600 = vmatpush1.msra.mxu0 0.0
    %1601 = vmatprep.subr.mxu0 0.0
    %1602 = vmatpush1.msra.mxu0 0.0
    %1603 = vmatprep.subr.mxu0 0.0
    %1604 = vmatpush1.msra.mxu0 0.0
    %1605 = vmatprep.subr.mxu0 0.0
    %1606 = vmatpush1.msra.mxu0 0.0
    %1607 = vmatprep.subr.mxu0 0.0
    %1608 = vmatpush1.msra.mxu0 0.0
    %1609 = vmatprep.subr.mxu0 0.0
    %1610 = vmatpush1.msra.mxu0 0.0
    %1611 = vmatprep.subr.mxu0 0.0
    %1612 = vmatpush1.msra.mxu0 0.0
    %1613 = vmatprep.subr.mxu0 0.0
    %1614 = vmatpush1.msra.mxu0 0.0
    %1615 = vmatprep.mubr.f32.mxu0 0.0
    %1616 = vmatmul.mubr.f32.gmra.mrb[0].mxu0 %v1451
    %v1617 = vpop.f32.mrb[0].mxu0
    %v1618 = vadd.f32 0.0, %v1617
    %v1619 = vpop.f32.mrb[0].mxu0
    %v1620 = vadd.f32 0.0, %v1619
    %1621 = vmatprep.mubr.f32.mxu0 0.0
    %1622 = vmatmul.mubr.f32.gmra.mrb[0].mxu0 %v1454
    %v1623 = vpop.f32.mrb[0].mxu0
    %v1624 = vadd.f32 0.0, %v1623
    %v1625 = vpop.f32.mrb[0].mxu0
    %v1626 = vadd.f32 0.0, %v1625
    %1627 = vmatprep.mubr.f32.mxu0 0.0
    %1628 = vmatmul.mubr.f32.gmra.mrb[0].mxu0 %v1457
    %v1629 = vpop.f32.mrb[0].mxu0
    %v1630 = vadd.f32 0.0, %v1629
    %v1631 = vpop.f32.mrb[0].mxu0
    %v1632 = vadd.f32 0.0, %v1631
    %1633 = vmatprep.mubr.f32.mxu0 0.0
    %1634 = vmatmul.mubr.f32.gmra.mrb[0].mxu0 %v1460
    %v1635 = vpop.f32.mrb[0].mxu0
    %v1636 = vadd.f32 0.0, %v1635
    %v1637 = vpop.f32.mrb[0].mxu0
    %v1638 = vadd.f32 0.0, %v1637
    %1639 = vdwg.mxu0
    %v1641 = vsel %vm1247, %v982, 0
    %v1644 = vsel %vm1247, %v983, 0
    %v1647 = vsel %vm1247, %v984, 0
    %v1650 = vsel %vm1247, %v985, 0
    %1652 = vmatprep.subr.mxu0 %v1435
    %1653 = vmatpush1.msra.mxu0 %v1434
    %1654 = vmatprep.subr.mxu0 %v1439
    %1655 = vmatpush1.msra.mxu0 %v1438
    %1656 = vmatprep.subr.mxu0 %v1443
    %1657 = vmatpush1.msra.mxu0 %v1442
    %1658 = vmatprep.subr.mxu0 %v1447
    %1659 = vmatpush1.msra.mxu0 %v1446
    %1660 = vmatprep.subr.mxu0 0.0
    %1661 = vmatpush1.msra.mxu0 0.0
    %1662 = vmatprep.subr.mxu0 0.0
    %1663 = vmatpush1.msra.mxu0 0.0
    %1664 = vmatprep.subr.mxu0 0.0
    %1665 = vmatpush1.msra.mxu0 0.0
    %1666 = vmatprep.subr.mxu0 0.0
    %1667 = vmatpush1.msra.mxu0 0.0
    %1668 = vmatprep.subr.mxu0 0.0
    %1669 = vmatpush1.msra.mxu0 0.0
    %1670 = vmatprep.subr.mxu0 0.0
    %1671 = vmatpush1.msra.mxu0 0.0
    %1672 = vmatprep.subr.mxu0 0.0
    %1673 = vmatpush1.msra.mxu0 0.0
    %1674 = vmatprep.subr.mxu0 0.0
    %1675 = vmatpush1.msra.mxu0 0.0
    %1676 = vmatprep.subr.mxu0 0.0
    %1677 = vmatpush1.msra.mxu0 0.0
    %1678 = vmatprep.subr.mxu0 0.0
    %1679 = vmatpush1.msra.mxu0 0.0
    %1680 = vmatprep.subr.mxu0 0.0
    %1681 = vmatpush1.msra.mxu0 0.0
    %1682 = vmatprep.subr.mxu0 0.0
    %1683 = vmatpush1.msra.mxu0 0.0
    %1684 = vmatprep.subr.mxu0 0.0
    %1685 = vmatpush1.msra.mxu0 0.0
    %1686 = vmatprep.subr.mxu0 0.0
    %1687 = vmatpush1.msra.mxu0 0.0
    %1688 = vmatprep.subr.mxu0 0.0
    %1689 = vmatpush1.msra.mxu0 0.0
    %1690 = vmatprep.subr.mxu0 0.0
    %1691 = vmatpush1.msra.mxu0 0.0
    %1692 = vmatprep.subr.mxu0 0.0
    %1693 = vmatpush1.msra.mxu0 0.0
    %1694 = vmatprep.subr.mxu0 0.0
    %1695 = vmatpush1.msra.mxu0 0.0
    %1696 = vmatprep.subr.mxu0 0.0
    %1697 = vmatpush1.msra.mxu0 0.0
    %1698 = vmatprep.subr.mxu0 0.0
    %1699 = vmatpush1.msra.mxu0 0.0
    %1700 = vmatprep.subr.mxu0 0.0
    %1701 = vmatpush1.msra.mxu0 0.0
    %1702 = vmatprep.subr.mxu0 0.0
    %1703 = vmatpush1.msra.mxu0 0.0
    %1704 = vmatprep.subr.mxu0 0.0
    %1705 = vmatpush1.msra.mxu0 0.0
    %1706 = vmatprep.subr.mxu0 0.0
    %1707 = vmatpush1.msra.mxu0 0.0
    %1708 = vmatprep.subr.mxu0 0.0
    %1709 = vmatpush1.msra.mxu0 0.0
    %1710 = vmatprep.subr.mxu0 0.0
    %1711 = vmatpush1.msra.mxu0 0.0
    %1712 = vmatprep.subr.mxu0 0.0
    %1713 = vmatpush1.msra.mxu0 0.0
    %1714 = vmatprep.subr.mxu0 0.0
    %1715 = vmatpush1.msra.mxu0 0.0
    %1716 = vmatprep.mubr.f32.mxu0 0.0
    %1717 = vmatmul.mubr.f32.gmra.mrb[0].mxu0 %v1641
    %v1718 = vpop.f32.mrb[0].mxu0
    %v1719 = vadd.f32 %v1529, %v1718
    %v1720 = vpop.f32.mrb[0].mxu0
    %v1721 = vadd.f32 %v1531, %v1720
    %1722 = vmatprep.mubr.f32.mxu0 0.0
    %1723 = vmatmul.mubr.f32.gmra.mrb[0].mxu0 %v1644
    %v1724 = vpop.f32.mrb[0].mxu0
    %v1725 = vadd.f32 %v1535, %v1724
    %v1726 = vpop.f32.mrb[0].mxu0
    %v1727 = vadd.f32 %v1537, %v1726
    %1728 = vmatprep.mubr.f32.mxu0 0.0
    %1729 = vmatmul.mubr.f32.gmra.mrb[0].mxu0 %v1647
    %v1730 = vpop.f32.mrb[0].mxu0
    %v1731 = vadd.f32 %v1541, %v1730
    %v1732 = vpop.f32.mrb[0].mxu0
    %v1733 = vadd.f32 %v1543, %v1732
    %1734 = vmatprep.mubr.f32.mxu0 0.0
    %1735 = vmatmul.mubr.f32.gmra.mrb[0].mxu0 %v1650
    %v1736 = vpop.f32.mrb[0].mxu0
    %v1737 = vadd.f32 %v1547, %v1736
    %v1738 = vpop.f32.mrb[0].mxu0
    %v1739 = vadd.f32 %v1549, %v1738
    %1740 = vdwg.mxu0
    %1741 = vmatprep.subr.mxu0 %v1437
    %1742 = vmatpush1.msra.mxu0 %v1436
    %1743 = vmatprep.subr.mxu0 %v1441
    %1744 = vmatpush1.msra.mxu0 %v1440
    %1745 = vmatprep.subr.mxu0 %v1445
    %1746 = vmatpush1.msra.mxu0 %v1444
    %1747 = vmatprep.subr.mxu0 %v1449
    %1748 = vmatpush1.msra.mxu0 %v1448
    %1749 = vmatprep.subr.mxu0 0.0
    %1750 = vmatpush1.msra.mxu0 0.0
    %1751 = vmatprep.subr.mxu0 0.0
    %1752 = vmatpush1.msra.mxu0 0.0
    %1753 = vmatprep.subr.mxu0 0.0
    %1754 = vmatpush1.msra.mxu0 0.0
    %1755 = vmatprep.subr.mxu0 0.0
    %1756 = vmatpush1.msra.mxu0 0.0
    %1757 = vmatprep.subr.mxu0 0.0
    %1758 = vmatpush1.msra.mxu0 0.0
    %1759 = vmatprep.subr.mxu0 0.0
    %1760 = vmatpush1.msra.mxu0 0.0
    %1761 = vmatprep.subr.mxu0 0.0
    %1762 = vmatpush1.msra.mxu0 0.0
    %1763 = vmatprep.subr.mxu0 0.0
    %1764 = vmatpush1.msra.mxu0 0.0
    %1765 = vmatprep.subr.mxu0 0.0
    %1766 = vmatpush1.msra.mxu0 0.0
    %1767 = vmatprep.subr.mxu0 0.0
    %1768 = vmatpush1.msra.mxu0 0.0
    %1769 = vmatprep.subr.mxu0 0.0
    %1770 = vmatpush1.msra.mxu0 0.0
    %1771 = vmatprep.subr.mxu0 0.0
    %1772 = vmatpush1.msra.mxu0 0.0
    %1773 = vmatprep.subr.mxu0 0.0
    %1774 = vmatpush1.msra.mxu0 0.0
    %1775 = vmatprep.subr.mxu0 0.0
    %1776 = vmatpush1.msra.mxu0 0.0
    %1777 = vmatprep.subr.mxu0 0.0
    %1778 = vmatpush1.msra.mxu0 0.0
    %1779 = vmatprep.subr.mxu0 0.0
    %1780 = vmatpush1.msra.mxu0 0.0
    %1781 = vmatprep.subr.mxu0 0.0
    %1782 = vmatpush1.msra.mxu0 0.0
    %1783 = vmatprep.subr.mxu0 0.0
    %1784 = vmatpush1.msra.mxu0 0.0
    %1785 = vmatprep.subr.mxu0 0.0
    %1786 = vmatpush1.msra.mxu0 0.0
    %1787 = vmatprep.subr.mxu0 0.0
    %1788 = vmatpush1.msra.mxu0 0.0
    %1789 = vmatprep.subr.mxu0 0.0
    %1790 = vmatpush1.msra.mxu0 0.0
    %1791 = vmatprep.subr.mxu0 0.0
    %1792 = vmatpush1.msra.mxu0 0.0
    %1793 = vmatprep.subr.mxu0 0.0
    %1794 = vmatpush1.msra.mxu0 0.0
    %1795 = vmatprep.subr.mxu0 0.0
    %1796 = vmatpush1.msra.mxu0 0.0
    %1797 = vmatprep.subr.mxu0 0.0
    %1798 = vmatpush1.msra.mxu0 0.0
    %1799 = vmatprep.subr.mxu0 0.0
    %1800 = vmatpush1.msra.mxu0 0.0
    %1801 = vmatprep.subr.mxu0 0.0
    %1802 = vmatpush1.msra.mxu0 0.0
    %1803 = vmatprep.subr.mxu0 0.0
    %1804 = vmatpush1.msra.mxu0 0.0
    %1805 = vmatprep.mubr.f32.mxu0 0.0
    %1806 = vmatmul.mubr.f32.gmra.mrb[0].mxu0 %v1641
    %v1807 = vpop.f32.mrb[0].mxu0
    %v1808 = vadd.f32 %v1618, %v1807
    %v1809 = vpop.f32.mrb[0].mxu0
    %v1810 = vadd.f32 %v1620, %v1809
    %1811 = vmatprep.mubr.f32.mxu0 0.0
    %1812 = vmatmul.mubr.f32.gmra.mrb[0].mxu0 %v1644
    %v1813 = vpop.f32.mrb[0].mxu0
    %v1814 = vadd.f32 %v1624, %v1813
    %v1815 = vpop.f32.mrb[0].mxu0
    %v1816 = vadd.f32 %v1626, %v1815
    %1817 = vmatprep.mubr.f32.mxu0 0.0
    %1818 = vmatmul.mubr.f32.gmra.mrb[0].mxu0 %v1647
    %v1819 = vpop.f32.mrb[0].mxu0
    %v1820 = vadd.f32 %v1630, %v1819
    %v1821 = vpop.f32.mrb[0].mxu0
    %v1822 = vadd.f32 %v1632, %v1821
    %1823 = vmatprep.mubr.f32.mxu0 0.0
    %1824 = vmatmul.mubr.f32.gmra.mrb[0].mxu0 %v1650
    %v1825 = vpop.f32.mrb[0].mxu0
    %v1826 = vadd.f32 %v1636, %v1825
    %v1827 = vpop.f32.mrb[0].mxu0
    %v1828 = vadd.f32 %v1638, %v1827
    %1829 = vdwg.mxu0
    %1830 = vset.pattern.permute.xlu0 64
    %1831 = vperm.xlu0 %1830, %v982
    %v1832 = vpop.permute.xlu0 %1831
    %1834 = vset.pattern.permute.xlu0 64
    %1835 = vperm.xlu0 %1834, %v983
    %v1836 = vpop.permute.xlu0 %1835
    %1838 = vset.pattern.permute.xlu0 64
    %1839 = vperm.xlu0 %1838, %v984
    %v1840 = vpop.permute.xlu0 %1839
    %1842 = vset.pattern.permute.xlu0 64
    %1843 = vperm.xlu0 %1842, %v985
    %v1844 = vpop.permute.xlu0 %1843
    %v1846 = vadd.f32 %v1719, %v1832
    %v1847 = vadd.f32 %v1721, %v1832
    %v1848 = vadd.f32 %v1808, %v1832
    %v1849 = vadd.f32 %v1810, %v1832
    %v1850 = vadd.f32 %v1725, %v1836
    %v1851 = vadd.f32 %v1727, %v1836
    %v1852 = vadd.f32 %v1814, %v1836
    %v1853 = vadd.f32 %v1816, %v1836
    %v1854 = vadd.f32 %v1731, %v1840
    %v1855 = vadd.f32 %v1733, %v1840
    %v1856 = vadd.f32 %v1820, %v1840
    %v1857 = vadd.f32 %v1822, %v1840
    %v1858 = vadd.f32 %v1737, %v1844
    %v1859 = vadd.f32 %v1739, %v1844
    %v1860 = vadd.f32 %v1826, %v1844
    %v1861 = vadd.f32 %v1828, %v1844
    %v1862 = vmax.f32 %v1846, 0.0
    %v1863 = vmax.f32 %v1847, 0.0
    %v1864 = vmax.f32 %v1848, 0.0
    %v1865 = vmax.f32 %v1849, 0.0
    %v1866 = vmax.f32 %v1850, 0.0
    %v1867 = vmax.f32 %v1851, 0.0
    %v1868 = vmax.f32 %v1852, 0.0
    %v1869 = vmax.f32 %v1853, 0.0
    %v1870 = vmax.f32 %v1854, 0.0
    %v1871 = vmax.f32 %v1855, 0.0
    %v1872 = vmax.f32 %v1856, 0.0
    %v1873 = vmax.f32 %v1857, 0.0
    %v1874 = vmax.f32 %v1858, 0.0
    %v1875 = vmax.f32 %v1859, 0.0
    %v1876 = vmax.f32 %v1860, 0.0
    %v1877 = vmax.f32 %v1861, 0.0
    %1879 = vset.pattern.permute.xlu0 64
    %1880 = vperm.xlu0 %1879, %v990
    %v1881 = vpop.permute.xlu0 %1880
    %v1883 = vsel %vm1247, %v990, 0
    %1885 = vmatprep.subr.mxu0 %v1863
    %1886 = vmatpush1.msra.mxu0 %v1862
    %1887 = vmatprep.subr.mxu0 %v1867
    %1888 = vmatpush1.msra.mxu0 %v1866
    %1889 = vmatprep.subr.mxu0 %v1871
    %1890 = vmatpush1.msra.mxu0 %v1870
    %1891 = vmatprep.subr.mxu0 %v1875
    %1892 = vmatpush1.msra.mxu0 %v1874
    %1893 = vmatprep.subr.mxu0 0.0
    %1894 = vmatpush1.msra.mxu0 0.0
    %1895 = vmatprep.subr.mxu0 0.0
    %1896 = vmatpush1.msra.mxu0 0.0
    %1897 = vmatprep.subr.mxu0 0.0
    %1898 = vmatpush1.msra.mxu0 0.0
    %1899 = vmatprep.subr.mxu0 0.0
    %1900 = vmatpush1.msra.mxu0 0.0
    %1901 = vmatprep.subr.mxu0 0.0
    %1902 = vmatpush1.msra.mxu0 0.0
    %1903 = vmatprep.subr.mxu0 0.0
    %1904 = vmatpush1.msra.mxu0 0.0
    %1905 = vmatprep.subr.mxu0 0.0
    %1906 = vmatpush1.msra.mxu0 0.0
    %1907 = vmatprep.subr.mxu0 0.0
    %1908 = vmatpush1.msra.mxu0 0.0
    %1909 = vmatprep.subr.mxu0 0.0
    %1910 = vmatpush1.msra.mxu0 0.0
    %1911 = vmatprep.subr.mxu0 0.0
    %1912 = vmatpush1.msra.mxu0 0.0
    %1913 = vmatprep.subr.mxu0 0.0
    %1914 = vmatpush1.msra.mxu0 0.0
    %1915 = vmatprep.subr.mxu0 0.0
    %1916 = vmatpush1.msra.mxu0 0.0
    %1917 = vmatprep.subr.mxu0 0.0
    %1918 = vmatpush1.msra.mxu0 0.0
    %1919 = vmatprep.subr.mxu0 0.0
    %1920 = vmatpush1.msra.mxu0 0.0
    %1921 = vmatprep.subr.mxu0 0.0
    %1922 = vmatpush1.msra.mxu0 0.0
    %1923 = vmatprep.subr.mxu0 0.0
    %1924 = vmatpush1.msra.mxu0 0.0
    %1925 = vmatprep.subr.mxu0 0.0
    %1926 = vmatpush1.msra.mxu0 0.0
    %1927 = vmatprep.subr.mxu0 0.0
    %1928 = vmatpush1.msra.mxu0 0.0
    %1929 = vmatprep.subr.mxu0 0.0
    %1930 = vmatpush1.msra.mxu0 0.0
    %1931 = vmatprep.subr.mxu0 0.0
    %1932 = vmatpush1.msra.mxu0 0.0
    %1933 = vmatprep.subr.mxu0 0.0
    %1934 = vmatpush1.msra.mxu0 0.0
    %1935 = vmatprep.subr.mxu0 0.0
    %1936 = vmatpush1.msra.mxu0 0.0
    %1937 = vmatprep.subr.mxu0 0.0
    %1938 = vmatpush1.msra.mxu0 0.0
    %1939 = vmatprep.subr.mxu0 0.0
    %1940 = vmatpush1.msra.mxu0 0.0
    %1941 = vmatprep.subr.mxu0 0.0
    %1942 = vmatpush1.msra.mxu0 0.0
    %1943 = vmatprep.subr.mxu0 0.0
    %1944 = vmatpush1.msra.mxu0 0.0
    %1945 = vmatprep.subr.mxu0 0.0
    %1946 = vmatpush1.msra.mxu0 0.0
    %1947 = vmatprep.subr.mxu0 0.0
    %1948 = vmatpush1.msra.mxu0 0.0
    %1949 = vmatprep.mubr.f32.mxu0 0.0
    %1950 = vmatmul.mubr.f32.gmra.mrb[0].mxu0 %v1883
    %v1951 = vpop.f32.mrb[0].mxu0
    %v1952 = vadd.f32 %v1881, %v1951
    %v1953 = vpop.f32.mrb[0].mxu0
    %v1954 = vadd.f32 %v1881, %v1953
    %1955 = vdwg.mxu0
    %1956 = vmatprep.subr.mxu0 %v1865
    %1957 = vmatpush1.msra.mxu0 %v1864
    %1958 = vmatprep.subr.mxu0 %v1869
    %1959 = vmatpush1.msra.mxu0 %v1868
    %1960 = vmatprep.subr.mxu0 %v1873
    %1961 = vmatpush1.msra.mxu0 %v1872
    %1962 = vmatprep.subr.mxu0 %v1877
    %1963 = vmatpush1.msra.mxu0 %v1876
    %1964 = vmatprep.subr.mxu0 0.0
    %1965 = vmatpush1.msra.mxu0 0.0
    %1966 = vmatprep.subr.mxu0 0.0
    %1967 = vmatpush1.msra.mxu0 0.0
    %1968 = vmatprep.subr.mxu0 0.0
    %1969 = vmatpush1.msra.mxu0 0.0
    %1970 = vmatprep.subr.mxu0 0.0
    %1971 = vmatpush1.msra.mxu0 0.0
    %1972 = vmatprep.subr.mxu0 0.0
    %1973 = vmatpush1.msra.mxu0 0.0
    %1974 = vmatprep.subr.mxu0 0.0
    %1975 = vmatpush1.msra.mxu0 0.0
    %1976 = vmatprep.subr.mxu0 0.0
    %1977 = vmatpush1.msra.mxu0 0.0
    %1978 = vmatprep.subr.mxu0 0.0
    %1979 = vmatpush1.msra.mxu0 0.0
    %1980 = vmatprep.subr.mxu0 0.0
    %1981 = vmatpush1.msra.mxu0 0.0
    %1982 = vmatprep.subr.mxu0 0.0
    %1983 = vmatpush1.msra.mxu0 0.0
    %1984 = vmatprep.subr.mxu0 0.0
    %1985 = vmatpush1.msra.mxu0 0.0
    %1986 = vmatprep.subr.mxu0 0.0
    %1987 = vmatpush1.msra.mxu0 0.0
    %1988 = vmatprep.subr.mxu0 0.0
    %1989 = vmatpush1.msra.mxu0 0.0
    %1990 = vmatprep.subr.mxu0 0.0
    %1991 = vmatpush1.msra.mxu0 0.0
    %1992 = vmatprep.subr.mxu0 0.0
    %1993 = vmatpush1.msra.mxu0 0.0
    %1994 = vmatprep.subr.mxu0 0.0
    %1995 = vmatpush1.msra.mxu0 0.0
    %1996 = vmatprep.subr.mxu0 0.0
    %1997 = vmatpush1.msra.mxu0 0.0
    %1998 = vmatprep.subr.mxu0 0.0
    %1999 = vmatpush1.msra.mxu0 0.0
    %2000 = vmatprep.subr.mxu0 0.0
    %2001 = vmatpush1.msra.mxu0 0.0
    %2002 = vmatprep.subr.mxu0 0.0
    %2003 = vmatpush1.msra.mxu0 0.0
    %2004 = vmatprep.subr.mxu0 0.0
    %2005 = vmatpush1.msra.mxu0 0.0
    %2006 = vmatprep.subr.mxu0 0.0
    %2007 = vmatpush1.msra.mxu0 0.0
    %2008 = vmatprep.subr.mxu0 0.0
    %2009 = vmatpush1.msra.mxu0 0.0
    %2010 = vmatprep.subr.mxu0 0.0
    %2011 = vmatpush1.msra.mxu0 0.0
    %2012 = vmatprep.subr.mxu0 0.0
    %2013 = vmatpush1.msra.mxu0 0.0
    %2014 = vmatprep.subr.mxu0 0.0
    %2015 = vmatpush1.msra.mxu0 0.0
    %2016 = vmatprep.subr.mxu0 0.0
    %2017 = vmatpush1.msra.mxu0 0.0
    %2018 = vmatprep.subr.mxu0 0.0
    %2019 = vmatpush1.msra.mxu0 0.0
    %2020 = vmatprep.mubr.f32.mxu0 0.0
    %2021 = vmatmul.mubr.f32.gmra.mrb[0].mxu0 %v1883
    %v2022 = vpop.f32.mrb[0].mxu0
    %v2023 = vadd.f32 %v1881, %v2022
    %v2024 = vpop.f32.mrb[0].mxu0
    %v2025 = vadd.f32 %v1881, %v2024
    %2026 = vdwg.mxu0
    %v2027 = vxor.u32 %v1952, 2147483648
    %v2028 = vxor.u32 %v1954, 2147483648
    %v2029 = vxor.u32 %v2023, 2147483648
    %v2030 = vxor.u32 %v2025, 2147483648
    %v2031 = vmul.f32 %v2027, 1.442695
    %v2032 = vpow.pop %v2031
    %v2033 = vmul.f32 %v2028, 1.442695
    %v2034 = vpow.pop %v2033
    %v2035 = vmul.f32 %v2029, 1.442695
    %v2036 = vpow.pop %v2035
    %v2037 = vmul.f32 %v2030, 1.442695
    %v2038 = vpow.pop %v2037
    %v2039 = vadd.f32 %v2032, 1.0
    %v2040 = vadd.f32 %v2034, 1.0
    %v2041 = vadd.f32 %v2036, 1.0
    %v2042 = vadd.f32 %v2038, 1.0
    %v2043 = vrcp.pop %v2039
    %v2044 = vmul.f32 1.0, %v2043
    %v2045 = vrcp.pop %v2040
    %v2046 = vmul.f32 1.0, %v2045
    %v2047 = vrcp.pop %v2041
    %v2048 = vmul.f32 1.0, %v2047
    %v2049 = vrcp.pop %v2042
    %v2050 = vmul.f32 1.0, %v2049
    %v2053 = vcombine.low %v2044, %v2046
    %2055 = vst [vmem:[%s2] sm:$0x77] %v2053
    %v2058 = vcombine.low %v2048, %v2050
    %s2060 = scalar_lea.vmem %s2, 8
    %2061 = vst [vmem:[%s2060] sm:$0x77] %v2058
    // Predicated region
    $region18: #{graph_forward.1} parent=1 // pred_check
      _
    $region19: #{graph_forward.1} parent=1 // pred_check_branch
      %2063 = sbr.rel (0) target = $region21
    $region20: #{graph_forward.1} parent=1 // pred_region
      _
    $region21: #{graph_forward.1} parent=1 // pred_fallthru
      _
    // Predicated region
    $region22: #{graph_forward.1} parent=1 // pred_check
      _
    $region23: #{graph_forward.1} parent=1 // pred_check_branch
      %2065 = sbr.rel (0) target = $region25
    $region24: #{graph_forward.1} parent=1 // pred_region
      _
    $region25: #{graph_forward.1} parent=1 // pred_fallthru
      _
    %2066 = vsyncpa [#allocation3], 1
    %2067 = vsyncpa [#allocation4], 1

</llo_original>
